<compile_context>
chip_gen: v7x
topology: tpu7x:2x2x1
jax: 0.10.0
libtpu: 0.0.40
codegen_flags: <defaults>
</compile_context>

<pallas_src>
import jax
import jax.numpy as jnp
from jax.experimental import pallas as pl
from jax.experimental.pallas import tpu as pltpu


def _cbam_kernel(x_ref, w1_ref, b1_ref, w2_ref, b2_ref, cm_ref, shift_ref,
                 o_ref):
    xv = x_ref[...].astype(jnp.float32)                  # (TB, C, HW)

    # ---------------- Channel attention ----------------
    avg_c = jnp.mean(xv, axis=2)                         # (TB, C)
    max_c = jnp.max(xv, axis=2)                          # (TB, C)

    w1t = w1_ref[...]                                    # (C, Cr)
    b1 = b1_ref[...]                                     # (1, Cr)
    w2t = w2_ref[...]                                    # (Cr, C)
    b2 = b2_ref[...]                                     # (1, C)

    def mlp(v):                                          # (TB, C) -> (TB, C)
        h = jnp.maximum(
            jnp.dot(v, w1t, preferred_element_type=jnp.float32) + b1, 0.0)
        return jnp.dot(h, w2t, preferred_element_type=jnp.float32) + b2

    att = jax.nn.sigmoid(mlp(avg_c) + mlp(max_c))        # (TB, C)
    xc = xv * att[:, :, None]                            # (TB, C, HW)

    # ---------------- Spatial attention ----------------
    # 7x7 'same' conv (2 in-planes -> 1 out-plane, no bias) expressed as a
    # matmul against a precomputed Toeplitz matrix; the BatchNorm scale is
    # already folded into cm_ref, only the shift is added here.
    avg_sp = jnp.mean(xc, axis=1)                        # (TB, HW)
    max_sp = jnp.max(xc, axis=1)                         # (TB, HW)
    conv = (jnp.dot(avg_sp, cm_ref[0], preferred_element_type=jnp.float32)
            + jnp.dot(max_sp, cm_ref[1], preferred_element_type=jnp.float32))
    gate = jax.nn.sigmoid(conv + shift_ref[0])           # (TB, HW)

    o_ref[...] = (xc * gate[:, None, :]).astype(o_ref.dtype)


def _conv_as_matrix(conv_w, H, W):
    """Build (2, HW, HW) matrices M s.t. flat 'same' cross-correlation equals
    avg_flat @ M[0] + max_flat @ M[1]  (matches nn.Conv2d(2, 1, K, pad=K//2))."""
    K = conv_w.shape[-1]
    PAD = K // 2
    HW = H * W
    oh = jnp.arange(HW) // W
    ow = jnp.arange(HW) % W
    kh = jnp.repeat(jnp.arange(K), K)                    # (K*K,)
    kw = jnp.tile(jnp.arange(K), K)                      # (K*K,)
    ih = oh[None, :] + kh[:, None] - PAD                 # (K*K, HW)
    iw = ow[None, :] + kw[:, None] - PAD
    valid = (ih >= 0) & (ih < H) & (iw >= 0) & (iw < W)
    src = ih * W + iw                                    # (K*K, HW)
    onehot = ((src[:, None, :] == jnp.arange(HW)[None, :, None])
              & valid[:, None, :]).astype(jnp.float32)   # (K*K, HW_in, HW_out)
    w_flat = conv_w.reshape(2, K * K).astype(jnp.float32)
    return jnp.einsum('ck,kio->cio', w_flat, onehot)     # (2, HW, HW)


def cbam_pallas(x, W1, b1, W2, b2, conv_w,
                bn_gamma, bn_beta, bn_mean, bn_var, eps=1e-5, block_b=8):
    B, C, H, W = x.shape
    Cr = W1.shape[0]
    HW = H * W

    # Fold BatchNorm (running statistics, eval mode) into scale * conv + shift.
    # TODO(synk): PyTorch training-mode batch statistics are not reproduced.
    bn_scale = (jnp.asarray(bn_gamma, jnp.float32)
                / jnp.sqrt(jnp.asarray(bn_var, jnp.float32) + eps)).reshape(())
    bn_shift = (jnp.asarray(bn_beta, jnp.float32)
                - jnp.asarray(bn_mean, jnp.float32) * bn_scale).reshape(())

    conv_mat = (_conv_as_matrix(conv_w, H, W) * bn_scale).astype(jnp.float32)
    shift_arr = bn_shift.reshape(1).astype(jnp.float32)          # (1,) -> SMEM

    # Pick TB: big enough to amortize per-grid-step overhead, small enough to
    # leave VMEM headroom (~6 live f32 copies of the x block: in/out
    # double-buffered + xv + xc) plus the double-buffered conv matrices,
    # sized against the smallest (v7x) VMEM budget.
    img_bytes = C * HW * 4
    budget = 24 * 1024 * 1024 - 2 * int(conv_mat.size) * 4
    max_tb = max(1, budget // (6 * img_bytes))
    TB = int(max(1, min(block_b, B, max_tb)))
    while B % TB:
        TB -= 1

    x3 = x.reshape(B, C, HW)                                     # lane-dense

    w1t = W1.T.astype(jnp.float32)                               # (C, Cr)
    b1r = b1.reshape(1, Cr).astype(jnp.float32)
    w2t = W2.T.astype(jnp.float32)                               # (Cr, C)
    b2r = b2.reshape(1, C).astype(jnp.float32)

    out3 = pl.pallas_call(
        _cbam_kernel,
        out_shape=jax.ShapeDtypeStruct((B, C, HW), x.dtype),
        grid_spec=pltpu.PrefetchScalarGridSpec(
            num_scalar_prefetch=0,
            grid=(B // TB,),
            in_specs=[
                pl.BlockSpec((TB, C, HW), lambda b: (b, 0, 0)),      # x
                pl.BlockSpec((C, Cr), lambda b: (0, 0)),             # W1^T
                pl.BlockSpec((1, Cr), lambda b: (0, 0)),             # b1
                pl.BlockSpec((Cr, C), lambda b: (0, 0)),             # W2^T
                pl.BlockSpec((1, C), lambda b: (0, 0)),              # b2
                pl.BlockSpec((2, HW, HW), lambda b: (0, 0, 0)),      # conv+BN mat
                pl.BlockSpec(memory_space=pltpu.MemorySpace.SMEM),   # BN shift
            ],
            out_specs=pl.BlockSpec((TB, C, HW), lambda b: (b, 0, 0)),
        ),
        compiler_params=pltpu.CompilerParams(
            dimension_semantics=("parallel",),
            vmem_limit_bytes=48 * 1024 * 1024),
    )(x3, w1t, b1r, w2t, b2r, conv_mat, shift_arr)

    return out3.reshape(B, C, H, W)


def cbam_ref(x, W1, b1, W2, b2, conv_w,
             bn_gamma, bn_beta, bn_mean, bn_var, eps=1e-5):
    """Pure-JAX reference mirroring the PyTorch forward (BN in eval mode)."""
    K = conv_w.shape[-1]
    PAD = K // 2
    avg = jnp.mean(x, axis=(2, 3))
    mx = jnp.max(x, axis=(2, 3))

    def mlp(v):
        h = jnp.maximum(v @ W1.T + b1, 0.0)
        return h @ W2.T + b2

    att = jax.nn.sigmoid(mlp(avg) + mlp(mx))
    xc = x * att[:, :, None, None]

    avg_sp = jnp.mean(xc, axis=1, keepdims=True)
    max_sp = jnp.max(xc, axis=1, keepdims=True)
    cat = jnp.concatenate([avg_sp, max_sp], axis=1)
    conv = jax.lax.conv_general_dilated(
        cat, conv_w, window_strides=(1, 1), padding=[(PAD, PAD), (PAD, PAD)],
        dimension_numbers=("NCHW", "OIHW", "NCHW"))
    bn = (conv - bn_mean) / jnp.sqrt(bn_var + eps) * bn_gamma + bn_beta
    return xc * jax.nn.sigmoid(bn)


if __name__ == "__main__":
    B, C, H, W = 8, 32, 16, 16
    reduction = 16
    Cr = C // reduction
    K = 7

    key = jax.random.PRNGKey(0)
    ks = jax.random.split(key, 6)
    x = jax.random.normal(ks[0], (B, C, H, W), jnp.float32)
    # PyTorch layout: Linear weight (out, in), conv weight (O, I, kh, kw).
    W1 = jax.random.normal(ks[1], (Cr, C), jnp.float32) * 0.2
    b1 = jax.random.normal(ks[2], (Cr,), jnp.float32) * 0.1
    W2 = jax.random.normal(ks[3], (C, Cr), jnp.float32) * 0.2
    b2 = jax.random.normal(ks[4], (C,), jnp.float32) * 0.1
    conv_w = jax.random.normal(ks[5], (1, 2, K, K), jnp.float32) * 0.1
    bn_gamma = jnp.float32(1.3)
    bn_beta = jnp.float32(-0.2)
    bn_mean = jnp.float32(0.05)
    bn_var = jnp.float32(0.9)

    out = cbam_pallas(x, W1, b1, W2, b2, conv_w,
                      bn_gamma, bn_beta, bn_mean, bn_var, block_b=4)
    out = jax.block_until_ready(out)

    ref = cbam_ref(x, W1, b1, W2, b2, conv_w,
                   bn_gamma, bn_beta, bn_mean, bn_var)
    assert out.shape == (B, C, H, W), out.shape
    err = float(jnp.max(jnp.abs(out - ref)))
    assert jnp.allclose(out, ref, atol=2e-3, rtol=2e-3), err
    print("KERNEL_OK")
</pallas_src>

<mosaic_0001>
module attributes {stable_mosaic.version = 11 : i64} {
  func.func @_cbam_kernel(%arg0: i32, %arg1: memref<4x32x256xf32, #tpu.memory_space<vmem>>, %arg2: memref<32x2xf32, #tpu.memory_space<vmem>>, %arg3: memref<1x2xf32, #tpu.memory_space<vmem>>, %arg4: memref<2x32xf32, #tpu.memory_space<vmem>>, %arg5: memref<1x32xf32, #tpu.memory_space<vmem>>, %arg6: memref<2x256x256xf32, #tpu.memory_space<vmem>>, %arg7: memref<1xf32, #tpu.memory_space<smem>>, %arg8: memref<4x32x256xf32, #tpu.memory_space<vmem>>) attributes {dimension_semantics = [#tpu.dimension_semantics<parallel>], iteration_bounds = array<i64: 2>, scalar_prefetch = 0 : i64, scratch_operands = 0 : i64, tpu.core_type = #tpu.core_type<tc>, window_params = [{transform_indices = @transform_0, window_bounds = array<i64: 4, 32, 256>}, {pipeline_mode = #tpu.pipeline_mode<synchronous>, transform_indices = @transform_1, window_bounds = array<i64: 32, 2>}, {pipeline_mode = #tpu.pipeline_mode<synchronous>, transform_indices = @transform_2, window_bounds = array<i64: 1, 2>}, {pipeline_mode = #tpu.pipeline_mode<synchronous>, transform_indices = @transform_3, window_bounds = array<i64: 2, 32>}, {pipeline_mode = #tpu.pipeline_mode<synchronous>, transform_indices = @transform_4, window_bounds = array<i64: 1, 32>}, {pipeline_mode = #tpu.pipeline_mode<synchronous>, transform_indices = @transform_5, window_bounds = array<i64: 2, 256, 256>}, {transform_indices = @transform_6, window_bounds = array<i64: 1>}, {transform_indices = @transform_7, window_bounds = array<i64: 4, 32, 256>}]} {
    %c0 = arith.constant 0 : index
    %c0_0 = arith.constant 0 : index
    %c0_1 = arith.constant 0 : index
    %0 = vector.load %arg1[%c0, %c0_0, %c0_1] : memref<4x32x256xf32, #tpu.memory_space<vmem>>, vector<4x32x256xf32>
    %cst = arith.constant dense<0.000000e+00> : vector<4x32xf32>
    %1 = vector.multi_reduction <add>, %0, %cst [2] : vector<4x32x256xf32> to vector<4x32xf32>
    %cst_2 = arith.constant 2.560000e+02 : f32
    %2 = vector.broadcast %cst_2 : f32 to vector<4x32xf32>
    %3 = arith.divf %1, %2 : vector<4x32xf32>
    %cst_3 = arith.constant dense<0xFF800000> : vector<4x32xf32>
    %4 = vector.multi_reduction <maximumf>, %0, %cst_3 [2] : vector<4x32x256xf32> to vector<4x32xf32>
    %c0_4 = arith.constant 0 : index
    %c0_5 = arith.constant 0 : index
    %5 = vector.load %arg2[%c0_4, %c0_5] : memref<32x2xf32, #tpu.memory_space<vmem>>, vector<32x2xf32>
    %c0_6 = arith.constant 0 : index
    %c0_7 = arith.constant 0 : index
    %6 = vector.load %arg3[%c0_6, %c0_7] : memref<1x2xf32, #tpu.memory_space<vmem>>, vector<1x2xf32>
    %c0_8 = arith.constant 0 : index
    %c0_9 = arith.constant 0 : index
    %7 = vector.load %arg4[%c0_8, %c0_9] : memref<2x32xf32, #tpu.memory_space<vmem>>, vector<2x32xf32>
    %c0_10 = arith.constant 0 : index
    %c0_11 = arith.constant 0 : index
    %8 = vector.load %arg5[%c0_10, %c0_11] : memref<1x32xf32, #tpu.memory_space<vmem>>, vector<1x32xf32>
    %cst_12 = arith.constant dense<0.000000e+00> : vector<4x2xf32>
    %9 = tpu.matmul %3, %5, %cst_12 {dimension_numbers = #tpu.dot_dimension_numbers<[1], [0], [0], [1], [0, 0, 1, 1], [], []>} : vector<4x32xf32>, vector<32x2xf32>, vector<4x2xf32> -> vector<4x2xf32>
    %10 = vector.broadcast %6 : vector<1x2xf32> to vector<4x2xf32>
    %11 = arith.addf %9, %10 : vector<4x2xf32>
    %cst_13 = arith.constant 0.000000e+00 : f32
    %12 = vector.broadcast %cst_13 : f32 to vector<4x2xf32>
    %13 = arith.maximumf %11, %12 : vector<4x2xf32>
    %cst_14 = arith.constant dense<0.000000e+00> : vector<4x32xf32>
    %14 = tpu.matmul %13, %7, %cst_14 {dimension_numbers = #tpu.dot_dimension_numbers<[1], [0], [0], [1], [0, 0, 1, 1], [], []>} : vector<4x2xf32>, vector<2x32xf32>, vector<4x32xf32> -> vector<4x32xf32>
    %15 = vector.broadcast %8 : vector<1x32xf32> to vector<4x32xf32>
    %16 = arith.addf %14, %15 : vector<4x32xf32>
    %cst_15 = arith.constant dense<0.000000e+00> : vector<4x2xf32>
    %17 = tpu.matmul %4, %5, %cst_15 {dimension_numbers = #tpu.dot_dimension_numbers<[1], [0], [0], [1], [0, 0, 1, 1], [], []>} : vector<4x32xf32>, vector<32x2xf32>, vector<4x2xf32> -> vector<4x2xf32>
    %18 = vector.broadcast %6 : vector<1x2xf32> to vector<4x2xf32>
    %19 = arith.addf %17, %18 : vector<4x2xf32>
    %cst_16 = arith.constant 0.000000e+00 : f32
    %20 = vector.broadcast %cst_16 : f32 to vector<4x2xf32>
    %21 = arith.maximumf %19, %20 : vector<4x2xf32>
    %cst_17 = arith.constant dense<0.000000e+00> : vector<4x32xf32>
    %22 = tpu.matmul %21, %7, %cst_17 {dimension_numbers = #tpu.dot_dimension_numbers<[1], [0], [0], [1], [0, 0, 1, 1], [], []>} : vector<4x2xf32>, vector<2x32xf32>, vector<4x32xf32> -> vector<4x32xf32>
    %23 = vector.broadcast %8 : vector<1x32xf32> to vector<4x32xf32>
    %24 = arith.addf %22, %23 : vector<4x32xf32>
    %25 = arith.addf %16, %24 : vector<4x32xf32>
    %26 = arith.negf %25 : vector<4x32xf32>
    %27 = math.exp %26 : vector<4x32xf32>
    %cst_18 = arith.constant 1.000000e+00 : f32
    %28 = vector.broadcast %cst_18 : f32 to vector<4x32xf32>
    %29 = arith.addf %28, %27 : vector<4x32xf32>
    %30 = arith.divf %28, %29 : vector<4x32xf32>
    %31 = vector.shape_cast %30 : vector<4x32xf32> to vector<4x32x1xf32>
    %32 = vector.broadcast %31 : vector<4x32x1xf32> to vector<4x32x256xf32>
    %33 = arith.mulf %0, %32 : vector<4x32x256xf32>
    %cst_19 = arith.constant dense<0.000000e+00> : vector<4x256xf32>
    %34 = vector.multi_reduction <add>, %33, %cst_19 [1] : vector<4x32x256xf32> to vector<4x256xf32>
    %cst_20 = arith.constant 3.200000e+01 : f32
    %35 = vector.broadcast %cst_20 : f32 to vector<4x256xf32>
    %36 = arith.divf %34, %35 : vector<4x256xf32>
    %cst_21 = arith.constant dense<0xFF800000> : vector<4x256xf32>
    %37 = vector.multi_reduction <maximumf>, %33, %cst_21 [1] : vector<4x32x256xf32> to vector<4x256xf32>
    %c0_22 = arith.constant 0 : index
    %c0_23 = arith.constant 0 : index
    %c0_24 = arith.constant 0 : index
    %38 = vector.load %arg6[%c0_22, %c0_23, %c0_24] : memref<2x256x256xf32, #tpu.memory_space<vmem>>, vector<1x256x256xf32>
    %39 = vector.shape_cast %38 : vector<1x256x256xf32> to vector<256x256xf32>
    %cst_25 = arith.constant dense<0.000000e+00> : vector<4x256xf32>
    %40 = tpu.matmul %36, %39, %cst_25 {dimension_numbers = #tpu.dot_dimension_numbers<[1], [0], [0], [1], [0, 0, 1, 1], [], []>} : vector<4x256xf32>, vector<256x256xf32>, vector<4x256xf32> -> vector<4x256xf32>
    %c1 = arith.constant 1 : index
    %c0_26 = arith.constant 0 : index
    %c0_27 = arith.constant 0 : index
    %41 = vector.load %arg6[%c1, %c0_26, %c0_27] : memref<2x256x256xf32, #tpu.memory_space<vmem>>, vector<1x256x256xf32>
    %42 = vector.shape_cast %41 : vector<1x256x256xf32> to vector<256x256xf32>
    %cst_28 = arith.constant dense<0.000000e+00> : vector<4x256xf32>
    %43 = tpu.matmul %37, %42, %cst_28 {dimension_numbers = #tpu.dot_dimension_numbers<[1], [0], [0], [1], [0, 0, 1, 1], [], []>} : vector<4x256xf32>, vector<256x256xf32>, vector<4x256xf32> -> vector<4x256xf32>
    %44 = arith.addf %40, %43 : vector<4x256xf32>
    %c0_29 = arith.constant 0 : index
    %45 = memref.load %arg7[%c0_29] : memref<1xf32, #tpu.memory_space<smem>>
    %46 = vector.broadcast %45 : f32 to vector<4x256xf32>
    %47 = arith.addf %44, %46 : vector<4x256xf32>
    %48 = arith.negf %47 : vector<4x256xf32>
    %49 = math.exp %48 : vector<4x256xf32>
    %cst_30 = arith.constant 1.000000e+00 : f32
    %50 = vector.broadcast %cst_30 : f32 to vector<4x256xf32>
    %51 = arith.addf %50, %49 : vector<4x256xf32>
    %52 = arith.divf %50, %51 : vector<4x256xf32>
    %53 = vector.shape_cast %52 : vector<4x256xf32> to vector<4x1x256xf32>
    %54 = vector.broadcast %53 : vector<4x1x256xf32> to vector<4x32x256xf32>
    %55 = arith.mulf %33, %54 : vector<4x32x256xf32>
    %c0_31 = arith.constant 0 : index
    %c0_32 = arith.constant 0 : index
    %c0_33 = arith.constant 0 : index
    %56 = vector.load %arg8[%c0_31, %c0_32, %c0_33] : memref<4x32x256xf32, #tpu.memory_space<vmem>>, vector<4x32x256xf32>
    tpu.vector_store %arg8[%c0_31, %c0_32, %c0_33], %55 {strides = array<i32>} : memref<4x32x256xf32, #tpu.memory_space<vmem>>, vector<4x32x256xf32>,
    return
  }
  func.func @transform_0(%arg0: i32) -> (i32, i32, i32) {
    %c0_i32 = arith.constant 0 : i32
    %c0_i32_0 = arith.constant 0 : i32
    %c0_i32_1 = arith.constant 0 : i32
    return %arg0, %c0_i32, %c0_i32_0 : i32, i32, i32
  }
  func.func @transform_1(%arg0: i32) -> (i32, i32) {
    %c0_i32 = arith.constant 0 : i32
    %c0_i32_0 = arith.constant 0 : i32
    %c0_i32_1 = arith.constant 0 : i32
    return %c0_i32, %c0_i32_0 : i32, i32
  }
  func.func @transform_2(%arg0: i32) -> (i32, i32) {
    %c0_i32 = arith.constant 0 : i32
    %c0_i32_0 = arith.constant 0 : i32
    %c0_i32_1 = arith.constant 0 : i32
    return %c0_i32, %c0_i32_0 : i32, i32
  }
  func.func @transform_3(%arg0: i32) -> (i32, i32) {
    %c0_i32 = arith.constant 0 : i32
    %c0_i32_0 = arith.constant 0 : i32
    %c0_i32_1 = arith.constant 0 : i32
    return %c0_i32, %c0_i32_0 : i32, i32
  }
  func.func @transform_4(%arg0: i32) -> (i32, i32) {
    %c0_i32 = arith.constant 0 : i32
    %c0_i32_0 = arith.constant 0 : i32
    %c0_i32_1 = arith.constant 0 : i32
    return %c0_i32, %c0_i32_0 : i32, i32
  }
  func.func @transform_5(%arg0: i32) -> (i32, i32, i32) {
    %c0_i32 = arith.constant 0 : i32
    %c0_i32_0 = arith.constant 0 : i32
    %c0_i32_1 = arith.constant 0 : i32
    %c0_i32_2 = arith.constant 0 : i32
    return %c0_i32, %c0_i32_0, %c0_i32_1 : i32, i32, i32
  }
  func.func @transform_6(%arg0: i32) -> i32 {
    %c0_i32 = arith.constant 0 : i32
    %c0_i32_0 = arith.constant 0 : i32
    return %c0_i32 : i32
  }
  func.func @transform_7(%arg0: i32) -> (i32, i32, i32) {
    %c0_i32 = arith.constant 0 : i32
    %c0_i32_0 = arith.constant 0 : i32
    %c0_i32_1 = arith.constant 0 : i32
    return %arg0, %c0_i32, %c0_i32_0 : i32, i32, i32
  }
}

</mosaic_0001>

<llo_original>
// kernel: tpu_custom_call.1
$region0: #{tpu_custom_call.1}
  #allocation0 [shape = 'u32[]', space=smem, size = 0x4, offset = 0x4, fixed_abs, tag = 'smem constant byte address 0x4 - core index']
  #allocation1 [shape = 'u32[144,128]{1,0:T(1,128)}', space=vmem, size = 0x12000, scoped, tag = 'internal scratch']
  #allocation2 [shape = 'f32[1]{0:T(128)S(6)}', space=smem, size = 0x200, scoped, tag = 'scoped memory for tpu_custom_call.1']
  %s0 = inlined_call_operand.hbm [shape: f32[8,32,256], index: 0, kind: input, shape index: {}]
  %s1 = inlined_call_operand.vmem [shape: f32[32,2], index: 1, kind: input, shape index: {}]
  %s2 = inlined_call_operand.vmem [shape: f32[1,2], index: 2, kind: input, shape index: {}]
  %s3 = inlined_call_operand.vmem [shape: f32[2,32], index: 3, kind: input, shape index: {}]
  %s4 = inlined_call_operand.vmem [shape: f32[1,32], index: 4, kind: input, shape index: {}]
  %s5 = inlined_call_operand.hbm [shape: f32[2,256,256], index: 5, kind: input, shape index: {}]
  %s6 = inlined_call_operand.<no memory space> [shape: f32[1], index: 6, kind: input, shape index: {}]
  %s7 = inlined_call_operand.hbm [shape: f32[8,32,256], index: 7, kind: output, shape index: {}]
  %s8 = sld [smem:[#allocation0]]
  $region69: #{tpu_custom_call.1} parent=0
    _
  %s10 = ssub.s32 1, %s8
  %s11 = scalar_select 0, %s10, %s8
  %12 = sst [smem:[#allocation2]] %s6
  $region1: #{tpu_custom_call.1} parent=0
    #allocation3 [shape = 'u8[262144]{0}', space=vmem, size = 0x40000, scoped, tag = 'input window, operand 0']
    #allocation4 [shape = 's32[2]{0}', space=sflag, size = 0x8, scoped, tag = 'scoped memory for tpu_custom_call.1']
    #allocation5 [shape = 's32[2]{0}', space=sflag, size = 0x8, scoped, tag = 'scoped memory for tpu_custom_call.1']
    #allocation6 [shape = 'u8[524288]{0}', space=vmem, size = 0x80000, scoped, tag = 'input window, operand 5, single buffered']
    #allocation7 [shape = 's32[1]{0}', space=sflag, size = 0x4, scoped, tag = 'scoped memory for tpu_custom_call.1']
    #allocation8 [shape = 'u8[262144]{0}', space=vmem, size = 0x40000, scoped, tag = 'output window, operand 0']
    %13 = vsyncpa [#allocation4], 0
    %s14 = scalar_lea.sflag [#allocation4], 1
    %15 = vsyncpa %s14, 0
    %16 = vsyncpa [#allocation7], 0
    %17 = vsyncpa [#allocation5], 0
    %s18 = scalar_lea.sflag [#allocation5], 1
    %19 = vsyncpa %s18, 0
    loop: start=0, step=1, limit=4
    $region2: #{tpu_custom_call.1} parent=1 // loop_pre_header
      _
    $region3: #{tpu_custom_call.1} parent=1 // loop_header
      %s21 = sphi 0, %s25
      %p22 = scmp.ge.s32.totalorder %s21, 4
      %s31 = sphi 0, %s33
      %s34 = sphi 0, %s31
      %s35 = sphi 0, %s34
      %s51 = sphi 0, %s35
      %s55 = sphi 0, %s55
      %s57 = sphi 0, %s55
      %s58 = sphi 0, %s57
      %s72 = sphi 0, %s58
      %s76 = sphi 0, %s76
      %s78 = sphi 0, %s76
      %s79 = sphi 0, %s78
      %s93 = sphi 0, %s79
      %s97 = sphi 0, %s97
      %s99 = sphi 0, %s97
      %s100 = sphi 0, %s99
      %s114 = sphi 0, %s100
      %s118 = sphi 0, %s118
      %s120 = sphi 0, %s118
      %s121 = sphi 0, %s120
      %s135 = sphi 0, %s121
      %s139 = sphi 0, %s139
      %s141 = sphi 0, %s139
      %s142 = sphi 0, %s141
      %s156 = sphi 0, %s142
      %s160 = sphi 0, %s160
      %s162 = sphi 0, %s160
      %s163 = sphi 0, %s162
      %s177 = sphi 0, %s163
      %s183 = sphi 0, %s185
      %s186 = sphi 0, %s183
      %s187 = sphi 0, %s186
      %s203 = sphi 0, %s187
    $region4: #{tpu_custom_call.1} parent=1 // loop_header_branch
      %24 = sbr.rel (%p22) target = $region8
    $region5: #{tpu_custom_call.1} parent=1 // loop_body
      %s26 = ssub.s32 %s21, 1
      %s27 = ssub.s32 %s21, 2
      %s28 = sadd.s32 %s21, 1
      %s29 = ssub.s32 %s21, %s28
      %p30 = scmp.eq.s32.totalorder %s29, 0
      %s32 = sadd.s32 %s31, 1
      %s33 = scalar_select %p30, %s31, %s32
      %p36 = pneg %p30
      %p37 = scmp.eq.s32.totalorder %s21, 1
      %p38 = por %p36, %p37
      %p39 = scmp.ne.s32.totalorder %s31, %s34
      %p40 = scmp.eq.s32.totalorder %s21, 0
      %p41 = por %p39, %p40
      %p42 = scmp.ne.s32.totalorder %s31, %s34
      %p43 = scmp.eq.s32.totalorder %s26, 1
      %p44 = por %p42, %p43
      %p45 = scmp.ne.s32.totalorder %s34, %s35
      %p46 = scmp.eq.s32.totalorder %s26, 0
      %p47 = por %p45, %p46
      %p48 = scmp.ne.s32.totalorder %s34, %s35
      %p49 = scmp.eq.s32.totalorder %s27, 1
      %p50 = por %p48, %p49
      %p52 = scmp.ne.s32.totalorder %s35, %s51
      %p53 = scmp.eq.s32.totalorder %s27, 0
      %p54 = por %p52, %p53
      %s56 = sadd.s32 %s55, 1
      %p59 = scmp.eq.s32.totalorder %s21, 1
      %p60 = scmp.ne.s32.totalorder %s55, %s57
      %p61 = scmp.eq.s32.totalorder %s21, 0
      %p62 = por %p60, %p61
      %p63 = scmp.ne.s32.totalorder %s55, %s57
      %p64 = scmp.eq.s32.totalorder %s26, 1
      %p65 = por %p63, %p64
      %p66 = scmp.ne.s32.totalorder %s57, %s58
      %p67 = scmp.eq.s32.totalorder %s26, 0
      %p68 = por %p66, %p67
      %p69 = scmp.ne.s32.totalorder %s57, %s58
      %p70 = scmp.eq.s32.totalorder %s27, 1
      %p71 = por %p69, %p70
      %p73 = scmp.ne.s32.totalorder %s58, %s72
      %p74 = scmp.eq.s32.totalorder %s27, 0
      %p75 = por %p73, %p74
      %s77 = sadd.s32 %s76, 1
      %p80 = scmp.eq.s32.totalorder %s21, 1
      %p81 = scmp.ne.s32.totalorder %s76, %s78
      %p82 = scmp.eq.s32.totalorder %s21, 0
      %p83 = por %p81, %p82
      %p84 = scmp.ne.s32.totalorder %s76, %s78
      %p85 = scmp.eq.s32.totalorder %s26, 1
      %p86 = por %p84, %p85
      %p87 = scmp.ne.s32.totalorder %s78, %s79
      %p88 = scmp.eq.s32.totalorder %s26, 0
      %p89 = por %p87, %p88
      %p90 = scmp.ne.s32.totalorder %s78, %s79
      %p91 = scmp.eq.s32.totalorder %s27, 1
      %p92 = por %p90, %p91
      %p94 = scmp.ne.s32.totalorder %s79, %s93
      %p95 = scmp.eq.s32.totalorder %s27, 0
      %p96 = por %p94, %p95
      %s98 = sadd.s32 %s97, 1
      %p101 = scmp.eq.s32.totalorder %s21, 1
      %p102 = scmp.ne.s32.totalorder %s97, %s99
      %p103 = scmp.eq.s32.totalorder %s21, 0
      %p104 = por %p102, %p103
      %p105 = scmp.ne.s32.totalorder %s97, %s99
      %p106 = scmp.eq.s32.totalorder %s26, 1
      %p107 = por %p105, %p106
      %p108 = scmp.ne.s32.totalorder %s99, %s100
      %p109 = scmp.eq.s32.totalorder %s26, 0
      %p110 = por %p108, %p109
      %p111 = scmp.ne.s32.totalorder %s99, %s100
      %p112 = scmp.eq.s32.totalorder %s27, 1
      %p113 = por %p111, %p112
      %p115 = scmp.ne.s32.totalorder %s100, %s114
      %p116 = scmp.eq.s32.totalorder %s27, 0
      %p117 = por %p115, %p116
      %s119 = sadd.s32 %s118, 1
      %p122 = scmp.eq.s32.totalorder %s21, 1
      %p123 = scmp.ne.s32.totalorder %s118, %s120
      %p124 = scmp.eq.s32.totalorder %s21, 0
      %p125 = por %p123, %p124
      %p126 = scmp.ne.s32.totalorder %s118, %s120
      %p127 = scmp.eq.s32.totalorder %s26, 1
      %p128 = por %p126, %p127
      %p129 = scmp.ne.s32.totalorder %s120, %s121
      %p130 = scmp.eq.s32.totalorder %s26, 0
      %p131 = por %p129, %p130
      %p132 = scmp.ne.s32.totalorder %s120, %s121
      %p133 = scmp.eq.s32.totalorder %s27, 1
      %p134 = por %p132, %p133
      %p136 = scmp.ne.s32.totalorder %s121, %s135
      %p137 = scmp.eq.s32.totalorder %s27, 0
      %p138 = por %p136, %p137
      %s140 = sadd.s32 %s139, 1
      %p143 = scmp.eq.s32.totalorder %s21, 1
      %p144 = scmp.ne.s32.totalorder %s139, %s141
      %p145 = scmp.eq.s32.totalorder %s21, 0
      %p146 = por %p144, %p145
      %p147 = scmp.ne.s32.totalorder %s139, %s141
      %p148 = scmp.eq.s32.totalorder %s26, 1
      %p149 = por %p147, %p148
      %p150 = scmp.ne.s32.totalorder %s141, %s142
      %p151 = scmp.eq.s32.totalorder %s26, 0
      %p152 = por %p150, %p151
      %p153 = scmp.ne.s32.totalorder %s141, %s142
      %p154 = scmp.eq.s32.totalorder %s27, 1
      %p155 = por %p153, %p154
      %p157 = scmp.ne.s32.totalorder %s142, %s156
      %p158 = scmp.eq.s32.totalorder %s27, 0
      %p159 = por %p157, %p158
      %s161 = sadd.s32 %s160, 1
      %p164 = scmp.eq.s32.totalorder %s21, 1
      %p165 = scmp.ne.s32.totalorder %s160, %s162
      %p166 = scmp.eq.s32.totalorder %s21, 0
      %p167 = por %p165, %p166
      %p168 = scmp.ne.s32.totalorder %s160, %s162
      %p169 = scmp.eq.s32.totalorder %s26, 1
      %p170 = por %p168, %p169
      %p171 = scmp.ne.s32.totalorder %s162, %s163
      %p172 = scmp.eq.s32.totalorder %s26, 0
      %p173 = por %p171, %p172
      %p174 = scmp.ne.s32.totalorder %s162, %s163
      %p175 = scmp.eq.s32.totalorder %s27, 1
      %p176 = por %p174, %p175
      %p178 = scmp.ne.s32.totalorder %s163, %s177
      %p179 = scmp.eq.s32.totalorder %s27, 0
      %p180 = por %p178, %p179
      %s181 = ssub.s32 %s21, %s28
      %p182 = scmp.eq.s32.totalorder %s181, 0
      %s184 = sadd.s32 %s183, 1
      %s185 = scalar_select %p182, %s183, %s184
      %p188 = pneg %p182
      %p189 = scmp.eq.s32.totalorder %s21, 1
      %p190 = por %p188, %p189
      %p191 = scmp.ne.s32.totalorder %s183, %s186
      %p192 = scmp.eq.s32.totalorder %s21, 0
      %p193 = por %p191, %p192
      %p194 = scmp.ne.s32.totalorder %s183, %s186
      %p195 = scmp.eq.s32.totalorder %s26, 1
      %p196 = por %p194, %p195
      %p197 = scmp.ne.s32.totalorder %s186, %s187
      %p198 = scmp.eq.s32.totalorder %s26, 0
      %p199 = por %p197, %p198
      %p200 = scmp.ne.s32.totalorder %s186, %s187
      %p201 = scmp.eq.s32.totalorder %s27, 1
      %p202 = por %p200, %p201
      %p204 = scmp.ne.s32.totalorder %s187, %s203
      %p205 = scmp.eq.s32.totalorder %s27, 0
      %p206 = por %p204, %p205
      %p207 = scmp.le.s32.totalorder 1, %s21
      %p208 = scmp.lt.s32.totalorder %s21, 3
      %p209 = pnand %p207, %p208
      %p210 = pneg %p209
      // Predicated region
      $region9: #{tpu_custom_call.1} parent=5 // pred_check
        _
      $region10: #{tpu_custom_call.1} parent=5 // pred_check_branch
        %212 = sbr.rel (%p209) target = $region12
      $region11: #{tpu_custom_call.1} parent=5 // pred_region
        %s213 = ssub.s32 %s21, 1
        // Predicated region
        $region13: #{tpu_custom_call.1} parent=11 // pred_check
          %p214 = pneg %p68
        $region14: #{tpu_custom_call.1} parent=11 // pred_check_branch
          %216 = sbr.rel (%p214) target = $region16
        $region15: #{tpu_custom_call.1} parent=11 // pred_region
          _
        $region16: #{tpu_custom_call.1} parent=11 // pred_fallthru
          _
        // Predicated region
        $region17: #{tpu_custom_call.1} parent=11 // pred_check
          %p217 = pneg %p89
        $region18: #{tpu_custom_call.1} parent=11 // pred_check_branch
          %219 = sbr.rel (%p217) target = $region20
        $region19: #{tpu_custom_call.1} parent=11 // pred_region
          _
        $region20: #{tpu_custom_call.1} parent=11 // pred_fallthru
          _
        // Predicated region
        $region21: #{tpu_custom_call.1} parent=11 // pred_check
          %p220 = pneg %p110
        $region22: #{tpu_custom_call.1} parent=11 // pred_check_branch
          %222 = sbr.rel (%p220) target = $region24
        $region23: #{tpu_custom_call.1} parent=11 // pred_region
          _
        $region24: #{tpu_custom_call.1} parent=11 // pred_fallthru
          _
        // Predicated region
        $region25: #{tpu_custom_call.1} parent=11 // pred_check
          %p223 = pneg %p131
        $region26: #{tpu_custom_call.1} parent=11 // pred_check_branch
          %225 = sbr.rel (%p223) target = $region28
        $region27: #{tpu_custom_call.1} parent=11 // pred_region
          _
        $region28: #{tpu_custom_call.1} parent=11 // pred_fallthru
          _
        // Predicated region
        $region29: #{tpu_custom_call.1} parent=11 // pred_check
          %p226 = pneg %p152
        $region30: #{tpu_custom_call.1} parent=11 // pred_check_branch
          %228 = sbr.rel (%p226) target = $region32
        $region31: #{tpu_custom_call.1} parent=11 // pred_region
          %s230 = ssub.s32 16384, 16384
          %231 = vsyncadd [#allocation7], %s230
          %s232 = sshll.u32 [#allocation6], 4
          %s233 = int_to_ptr.vmem [resolvable:$true] %s232
          %238 = dma.hbm_to_vmem [thread:$0]  %s5, 16384, %s233, [#allocation7], 256, 256, 16
        $region32: #{tpu_custom_call.1} parent=11 // pred_fallthru
          _
        // Predicated region
        $region33: #{tpu_custom_call.1} parent=11 // pred_check
          %p239 = pneg %p173
        $region34: #{tpu_custom_call.1} parent=11 // pred_check_branch
          %241 = sbr.rel (%p239) target = $region36
        $region35: #{tpu_custom_call.1} parent=11 // pred_region
          _
        $region36: #{tpu_custom_call.1} parent=11 // pred_fallthru
          _
      $region12: #{tpu_custom_call.1} parent=5 // pred_fallthru
        _
      %p242 = scmp.lt.s32.totalorder %s21, 2
      // Predicated region
      $region37: #{tpu_custom_call.1} parent=5 // pred_check
        %p243 = pneg %p242
      $region38: #{tpu_custom_call.1} parent=5 // pred_check_branch
        %245 = sbr.rel (%p243) target = $region40
      $region39: #{tpu_custom_call.1} parent=5 // pred_region
        // Predicated region
        $region41: #{tpu_custom_call.1} parent=39 // pred_check
          %p246 = pneg %p41
        $region42: #{tpu_custom_call.1} parent=39 // pred_check_branch
          %248 = sbr.rel (%p246) target = $region44
        $region43: #{tpu_custom_call.1} parent=39 // pred_region
          %s249 = sand.u32 %s31, 1
          %s250 = scalar_lea.sflag [#allocation4], %s249
          %s251 = sand.u32 %s31, 1
          %s252 = smul.addr %s251, 256
          %s253 = scalar_lea.vmem [#allocation3], %s252
          %s254 = smul.u32 4, %s21
          %s256 = ssub.s32 4096, 4096
          %257 = vsyncadd %s250, %s256
          %s258 = smul.addr %s254, 8
          %s259 = smul.addr %s258, 128
          %s260 = scalar_lea.hbm %s0, %s259
          %s261 = sshll.u32 %s253, 4
          %s262 = int_to_ptr.vmem [resolvable:$true] %s261
          %267 = dma.hbm_to_vmem [thread:$0]  %s260, 4096, %s262, %s250, 256, 256, 16
        $region44: #{tpu_custom_call.1} parent=39 // pred_fallthru
          _
      $region40: #{tpu_custom_call.1} parent=5 // pred_fallthru
        _
      %p268 = scmp.le.s32.totalorder 1, %s21
      %p269 = scmp.lt.s32.totalorder %s21, 3
      %p270 = pnand %p268, %p269
      %p271 = pneg %p270
      // Predicated region
      $region45: #{tpu_custom_call.1} parent=5 // pred_check
        _
      $region46: #{tpu_custom_call.1} parent=5 // pred_check_branch
        %273 = sbr.rel (%p270) target = $region48
      $region47: #{tpu_custom_call.1} parent=5 // pred_region
        %s274 = ssub.s32 %s21, 1
        %s275 = sand.u32 %s34, 1
        %s276 = scalar_lea.sflag [#allocation4], %s275
        %s277 = sand.u32 %s34, 1
        %s278 = smul.addr %s277, 256
        %s279 = scalar_lea.vmem [#allocation3], %s278
        // Predicated region
        $region49: #{tpu_custom_call.1} parent=47 // pred_check
          %p280 = pneg %p47
        $region50: #{tpu_custom_call.1} parent=47 // pred_check_branch
          %282 = sbr.rel (%p280) target = $region52
        $region51: #{tpu_custom_call.1} parent=47 // pred_region
          %283 = dma.done %s276, 4096
        $region52: #{tpu_custom_call.1} parent=47 // pred_fallthru
          _
        // Predicated region
        $region53: #{tpu_custom_call.1} parent=47 // pred_check
          %p284 = pneg %p152
        $region54: #{tpu_custom_call.1} parent=47 // pred_check_branch
          %286 = sbr.rel (%p284) target = $region56
        $region55: #{tpu_custom_call.1} parent=47 // pred_region
          %287 = dma.done [#allocation7], 16384
        $region56: #{tpu_custom_call.1} parent=47 // pred_fallthru
          _
        %s288 = sand.u32 %s34, 1
        %s289 = scalar_lea.sflag [#allocation4], %s288
        %s290 = sand.u32 %s34, 1
        %s291 = smul.addr %s290, 256
        %s292 = scalar_lea.vmem [#allocation3], %s291
        %p293 = pneg %p47
        %p294 = pneg %p44
        %p295 = pneg %p68
        %p296 = pneg %p65
        %p297 = pneg %p89
        %p298 = pneg %p86
        %p299 = pneg %p110
        %p300 = pneg %p107
        %p301 = pneg %p131
        %p302 = pneg %p128
        %p303 = pneg %p152
        %p304 = pneg %p149
        %p305 = pneg %p173
        %p306 = pneg %p170
        %p307 = pneg %p199
        %p308 = pneg %p196
        %s309 = sand.u32 %s186, 1
        %s310 = scalar_lea.sflag [#allocation5], %s309
        %s311 = sand.u32 %s186, 1
        %s312 = smul.addr %s311, 256
        %s313 = scalar_lea.vmem [#allocation8], %s312
        %s314 = smul.u32 4, %s26
        %s315 = smul.u32 4, %s26
        %v316 = vld [vmem:[%s279] sm:$0xff]
        %v317 = vld [vmem:[%s279 + $0x8] sm:$0xff]
        %v318 = vld [vmem:[%s279 + $0x10] sm:$0xff]
        %v319 = vld [vmem:[%s279 + $0x18] sm:$0xff]
        %v320 = vld [vmem:[%s279 + $0x20] sm:$0xff]
        %v321 = vld [vmem:[%s279 + $0x28] sm:$0xff]
        %v322 = vld [vmem:[%s279 + $0x30] sm:$0xff]
        %v323 = vld [vmem:[%s279 + $0x38] sm:$0xff]
        %v324 = vld [vmem:[%s279 + $0x40] sm:$0xff]
        %v325 = vld [vmem:[%s279 + $0x48] sm:$0xff]
        %v326 = vld [vmem:[%s279 + $0x50] sm:$0xff]
        %v327 = vld [vmem:[%s279 + $0x58] sm:$0xff]
        %v328 = vld [vmem:[%s279 + $0x60] sm:$0xff]
        %v329 = vld [vmem:[%s279 + $0x68] sm:$0xff]
        %v330 = vld [vmem:[%s279 + $0x70] sm:$0xff]
        %v331 = vld [vmem:[%s279 + $0x78] sm:$0xff]
        %v332 = vld [vmem:[%s279 + $0x80] sm:$0xff]
        %v333 = vld [vmem:[%s279 + $0x88] sm:$0xff]
        %v334 = vld [vmem:[%s279 + $0x90] sm:$0xff]
        %v335 = vld [vmem:[%s279 + $0x98] sm:$0xff]
        %v336 = vld [vmem:[%s279 + $0xa0] sm:$0xff]
        %v337 = vld [vmem:[%s279 + $0xa8] sm:$0xff]
        %v338 = vld [vmem:[%s279 + $0xb0] sm:$0xff]
        %v339 = vld [vmem:[%s279 + $0xb8] sm:$0xff]
        %v340 = vld [vmem:[%s279 + $0xc0] sm:$0xff]
        %v341 = vld [vmem:[%s279 + $0xc8] sm:$0xff]
        %v342 = vld [vmem:[%s279 + $0xd0] sm:$0xff]
        %v343 = vld [vmem:[%s279 + $0xd8] sm:$0xff]
        %v344 = vld [vmem:[%s279 + $0xe0] sm:$0xff]
        %v345 = vld [vmem:[%s279 + $0xe8] sm:$0xff]
        %v346 = vld [vmem:[%s279 + $0xf0] sm:$0xff]
        %v347 = vld [vmem:[%s279 + $0xf8] sm:$0xff]
        %v348 = vadd.f32 %v316, %v317
        %349 = vadd.xlane.f32.xlu0 %v348
        %v350 = vpop.xlane.xlu0 %349
        %v351 = vadd.f32 %v318, %v319
        %352 = vadd.xlane.f32.xlu0 %v351
        %v353 = vpop.xlane.xlu0 %352
        %v354 = vadd.f32 %v320, %v321
        %355 = vadd.xlane.f32.xlu0 %v354
        %v356 = vpop.xlane.xlu0 %355
        %v357 = vadd.f32 %v322, %v323
        %358 = vadd.xlane.f32.xlu0 %v357
        %v359 = vpop.xlane.xlu0 %358
        %v360 = vadd.f32 %v324, %v325
        %361 = vadd.xlane.f32.xlu0 %v360
        %v362 = vpop.xlane.xlu0 %361
        %v363 = vadd.f32 %v326, %v327
        %364 = vadd.xlane.f32.xlu0 %v363
        %v365 = vpop.xlane.xlu0 %364
        %v366 = vadd.f32 %v328, %v329
        %367 = vadd.xlane.f32.xlu0 %v366
        %v368 = vpop.xlane.xlu0 %367
        %v369 = vadd.f32 %v330, %v331
        %370 = vadd.xlane.f32.xlu0 %v369
        %v371 = vpop.xlane.xlu0 %370
        %v372 = vadd.f32 %v332, %v333
        %373 = vadd.xlane.f32.xlu0 %v372
        %v374 = vpop.xlane.xlu0 %373
        %v375 = vadd.f32 %v334, %v335
        %376 = vadd.xlane.f32.xlu0 %v375
        %v377 = vpop.xlane.xlu0 %376
        %v378 = vadd.f32 %v336, %v337
        %379 = vadd.xlane.f32.xlu0 %v378
        %v380 = vpop.xlane.xlu0 %379
        %v381 = vadd.f32 %v338, %v339
        %382 = vadd.xlane.f32.xlu0 %v381
        %v383 = vpop.xlane.xlu0 %382
        %v384 = vadd.f32 %v340, %v341
        %385 = vadd.xlane.f32.xlu0 %v384
        %v386 = vpop.xlane.xlu0 %385
        %v387 = vadd.f32 %v342, %v343
        %388 = vadd.xlane.f32.xlu0 %v387
        %v389 = vpop.xlane.xlu0 %388
        %v390 = vadd.f32 %v344, %v345
        %391 = vadd.xlane.f32.xlu0 %v390
        %v392 = vpop.xlane.xlu0 %391
        %v393 = vadd.f32 %v346, %v347
        %394 = vadd.xlane.f32.xlu0 %v393
        %v395 = vpop.xlane.xlu0 %394
        %v396 = vrcp.pop 256.0
        %v397 = vmul.f32 %v350, %v396
        %v398 = vmul.f32 %v353, %v396
        %v399 = vmul.f32 %v356, %v396
        %v400 = vmul.f32 %v359, %v396
        %v401 = vmul.f32 %v362, %v396
        %v402 = vmul.f32 %v365, %v396
        %v403 = vmul.f32 %v368, %v396
        %v404 = vmul.f32 %v371, %v396
        %v405 = vmul.f32 %v374, %v396
        %v406 = vmul.f32 %v377, %v396
        %v407 = vmul.f32 %v380, %v396
        %v408 = vmul.f32 %v383, %v396
        %v409 = vmul.f32 %v386, %v396
        %v410 = vmul.f32 %v389, %v396
        %v411 = vmul.f32 %v392, %v396
        %v412 = vmul.f32 %v395, %v396
        %v413 = vmax.f32 %v316, %v317
        %414 = vmax.xlane.f32.xlu0 %v413
        %v415 = vpop.xlane.xlu0 %414
        %v416 = vmax.f32 %v318, %v319
        %417 = vmax.xlane.f32.xlu0 %v416
        %v418 = vpop.xlane.xlu0 %417
        %v419 = vmax.f32 %v320, %v321
        %420 = vmax.xlane.f32.xlu0 %v419
        %v421 = vpop.xlane.xlu0 %420
        %v422 = vmax.f32 %v322, %v323
        %423 = vmax.xlane.f32.xlu0 %v422
        %v424 = vpop.xlane.xlu0 %423
        %v425 = vmax.f32 %v324, %v325
        %426 = vmax.xlane.f32.xlu0 %v425
        %v427 = vpop.xlane.xlu0 %426
        %v428 = vmax.f32 %v326, %v327
        %429 = vmax.xlane.f32.xlu0 %v428
        %v430 = vpop.xlane.xlu0 %429
        %v431 = vmax.f32 %v328, %v329
        %432 = vmax.xlane.f32.xlu0 %v431
        %v433 = vpop.xlane.xlu0 %432
        %v434 = vmax.f32 %v330, %v331
        %435 = vmax.xlane.f32.xlu0 %v434
        %v436 = vpop.xlane.xlu0 %435
        %v437 = vmax.f32 %v332, %v333
        %438 = vmax.xlane.f32.xlu0 %v437
        %v439 = vpop.xlane.xlu0 %438
        %v440 = vmax.f32 %v334, %v335
        %441 = vmax.xlane.f32.xlu0 %v440
        %v442 = vpop.xlane.xlu0 %441
        %v443 = vmax.f32 %v336, %v337
        %444 = vmax.xlane.f32.xlu0 %v443
        %v445 = vpop.xlane.xlu0 %444
        %v446 = vmax.f32 %v338, %v339
        %447 = vmax.xlane.f32.xlu0 %v446
        %v448 = vpop.xlane.xlu0 %447
        %v449 = vmax.f32 %v340, %v341
        %450 = vmax.xlane.f32.xlu0 %v449
        %v451 = vpop.xlane.xlu0 %450
        %v452 = vmax.f32 %v342, %v343
        %453 = vmax.xlane.f32.xlu0 %v452
        %v454 = vpop.xlane.xlu0 %453
        %v455 = vmax.f32 %v344, %v345
        %456 = vmax.xlane.f32.xlu0 %v455
        %v457 = vpop.xlane.xlu0 %456
        %v458 = vmax.f32 %v346, %v347
        %459 = vmax.xlane.f32.xlu0 %v458
        %v460 = vpop.xlane.xlu0 %459
        %v461 = vld [vmem:[%s1] sm:$0xff]
        %v462 = vld [vmem:[%s1 + $0x8] sm:$0xff]
        %v463 = vld [vmem:[%s1 + $0x10] sm:$0xff]
        %v464 = vld [vmem:[%s1 + $0x18] sm:$0xff]
        %v465 = vld [vmem:[%s2] sm:$0x1]
        %v466 = vld [vmem:[%s3] sm:$0x3]
        %v467 = vld [vmem:[%s4] sm:$0x1]
        %v469 = vlaneseq
        %v470 = vshrl.u32 %v469, 7
        %v471 = vsub.s32 0, %v470
        %v472 = vrot.slane %v465, %v471
        %v490 = vlaneseq
        %v491 = vand.u32 %v490, 127
        %v492 = vlaneseq
        %v493 = vshrl.u32 %v492, 7
        %v494 = vsub.s32 %v491, %v493
        %v495 = vrot.slane %v397, %v494
        %v496 = vadd.s32 %v491, 4294967288
        %v497 = vlaneseq
        %v498 = vshrl.u32 %v497, 7
        %v499 = vsub.s32 %v496, %v498
        %v500 = vrot.slane %v398, %v499
        %vm501 = vcmask 130112
        %v502 = vsel %vm501, %v500, %v495
        %v503 = vadd.s32 %v491, 4294967280
        %v504 = vlaneseq
        %v505 = vshrl.u32 %v504, 7
        %v506 = vsub.s32 %v503, %v505
        %v507 = vrot.slane %v399, %v506
        %vm508 = vcmask 195712
        %v509 = vsel %vm508, %v507, %v502
        %v510 = vadd.s32 %v491, 4294967272
        %v511 = vlaneseq
        %v512 = vshrl.u32 %v511, 7
        %v513 = vsub.s32 %v510, %v512
        %v514 = vrot.slane %v400, %v513
        %vm515 = vcmask 261312
        %v516 = vsel %vm515, %v514, %v509
        %v517 = vlaneseq
        %v518 = vshrl.u32 %v517, 7
        %v519 = vsub.s32 %v491, %v518
        %v520 = vrot.slane %v401, %v519
        %v521 = vlaneseq
        %v522 = vshrl.u32 %v521, 7
        %v523 = vsub.s32 %v496, %v522
        %v524 = vrot.slane %v402, %v523
        %v525 = vsel %vm501, %v524, %v520
        %v526 = vlaneseq
        %v527 = vshrl.u32 %v526, 7
        %v528 = vsub.s32 %v503, %v527
        %v529 = vrot.slane %v403, %v528
        %v530 = vsel %vm508, %v529, %v525
        %v531 = vlaneseq
        %v532 = vshrl.u32 %v531, 7
        %v533 = vsub.s32 %v510, %v532
        %v534 = vrot.slane %v404, %v533
        %v535 = vsel %vm515, %v534, %v530
        %v536 = vlaneseq
        %v537 = vshrl.u32 %v536, 7
        %v538 = vsub.s32 %v491, %v537
        %v539 = vrot.slane %v405, %v538
        %v540 = vlaneseq
        %v541 = vshrl.u32 %v540, 7
        %v542 = vsub.s32 %v496, %v541
        %v543 = vrot.slane %v406, %v542
        %v544 = vsel %vm501, %v543, %v539
        %v545 = vlaneseq
        %v546 = vshrl.u32 %v545, 7
        %v547 = vsub.s32 %v503, %v546
        %v548 = vrot.slane %v407, %v547
        %v549 = vsel %vm508, %v548, %v544
        %v550 = vlaneseq
        %v551 = vshrl.u32 %v550, 7
        %v552 = vsub.s32 %v510, %v551
        %v553 = vrot.slane %v408, %v552
        %v554 = vsel %vm515, %v553, %v549
        %v555 = vlaneseq
        %v556 = vshrl.u32 %v555, 7
        %v557 = vsub.s32 %v491, %v556
        %v558 = vrot.slane %v409, %v557
        %v559 = vlaneseq
        %v560 = vshrl.u32 %v559, 7
        %v561 = vsub.s32 %v496, %v560
        %v562 = vrot.slane %v410, %v561
        %v563 = vsel %vm501, %v562, %v558
        %v564 = vlaneseq
        %v565 = vshrl.u32 %v564, 7
        %v566 = vsub.s32 %v503, %v565
        %v567 = vrot.slane %v411, %v566
        %v568 = vsel %vm508, %v567, %v563
        %v569 = vlaneseq
        %v570 = vshrl.u32 %v569, 7
        %v571 = vsub.s32 %v510, %v570
        %v572 = vrot.slane %v412, %v571
        %v573 = vsel %vm515, %v572, %v568
        %vm574 = vcmask 1041409
        %v575 = vsel %vm574, %v535, %v516
        %vm576 = vcmask 1042434
        %v577 = vsel %vm576, %v554, %v575
        %vm578 = vcmask 1043459
        %v579 = vsel %vm578, %v573, %v577
        %vm580 = vcmask 261120
        %v581 = vsel %vm580, %v579, 0
        %583 = vmatprep.subr.mxu0 0.0
        %584 = vmatpush1.msra.mxu0 %v461
        %585 = vmatprep.subr.mxu0 0.0
        %586 = vmatpush1.msra.mxu0 %v462
        %587 = vmatprep.subr.mxu0 0.0
        %588 = vmatpush1.msra.mxu0 %v463
        %589 = vmatprep.subr.mxu0 0.0
        %590 = vmatpush1.msra.mxu0 %v464
        %591 = vmatprep.subr.mxu0 0.0
        %592 = vmatpush1.msra.mxu0 0.0
        %593 = vmatprep.subr.mxu0 0.0
        %594 = vmatpush1.msra.mxu0 0.0
        %595 = vmatprep.subr.mxu0 0.0
        %596 = vmatpush1.msra.mxu0 0.0
        %597 = vmatprep.subr.mxu0 0.0
        %598 = vmatpush1.msra.mxu0 0.0
        %599 = vmatprep.subr.mxu0 0.0
        %600 = vmatpush1.msra.mxu0 0.0
        %601 = vmatprep.subr.mxu0 0.0
        %602 = vmatpush1.msra.mxu0 0.0
        %603 = vmatprep.subr.mxu0 0.0
        %604 = vmatpush1.msra.mxu0 0.0
        %605 = vmatprep.subr.mxu0 0.0
        %606 = vmatpush1.msra.mxu0 0.0
        %607 = vmatprep.subr.mxu0 0.0
        %608 = vmatpush1.msra.mxu0 0.0
        %609 = vmatprep.subr.mxu0 0.0
        %610 = vmatpush1.msra.mxu0 0.0
        %611 = vmatprep.subr.mxu0 0.0
        %612 = vmatpush1.msra.mxu0 0.0
        %613 = vmatprep.subr.mxu0 0.0
        %614 = vmatpush1.msra.mxu0 0.0
        %615 = vmatprep.subr.mxu0 0.0
        %616 = vmatpush1.msra.mxu0 0.0
        %617 = vmatprep.subr.mxu0 0.0
        %618 = vmatpush1.msra.mxu0 0.0
        %619 = vmatprep.subr.mxu0 0.0
        %620 = vmatpush1.msra.mxu0 0.0
        %621 = vmatprep.subr.mxu0 0.0
        %622 = vmatpush1.msra.mxu0 0.0
        %623 = vmatprep.subr.mxu0 0.0
        %624 = vmatpush1.msra.mxu0 0.0
        %625 = vmatprep.subr.mxu0 0.0
        %626 = vmatpush1.msra.mxu0 0.0
        %627 = vmatprep.subr.mxu0 0.0
        %628 = vmatpush1.msra.mxu0 0.0
        %629 = vmatprep.subr.mxu0 0.0
        %630 = vmatpush1.msra.mxu0 0.0
        %631 = vmatprep.subr.mxu0 0.0
        %632 = vmatpush1.msra.mxu0 0.0
        %633 = vmatprep.subr.mxu0 0.0
        %634 = vmatpush1.msra.mxu0 0.0
        %635 = vmatprep.subr.mxu0 0.0
        %636 = vmatpush1.msra.mxu0 0.0
        %637 = vmatprep.subr.mxu0 0.0
        %638 = vmatpush1.msra.mxu0 0.0
        %639 = vmatprep.subr.mxu0 0.0
        %640 = vmatpush1.msra.mxu0 0.0
        %641 = vmatprep.subr.mxu0 0.0
        %642 = vmatpush1.msra.mxu0 0.0
        %643 = vmatprep.subr.mxu0 0.0
        %644 = vmatpush1.msra.mxu0 0.0
        %645 = vmatprep.subr.mxu0 0.0
        %646 = vmatpush1.msra.mxu0 0.0
        %647 = vmatprep.mubr.f32.mxu0 0.0
        %648 = vmatmul.mubr.f32.gmra.mrb[0].mxu0 %v581
        %v649 = vpop.f32.mrb[0].mxu0
        %v650 = vadd.f32 %v472, %v649
        %v651 = vpop.f32.mrb[0].mxu0
        %652 = vdwg.mxu0
        %v653 = vmax.f32 %v650, 0.0
        %v655 = vlaneseq
        %v656 = vshrl.u32 %v655, 7
        %v657 = vsub.s32 0, %v656
        %v658 = vrot.slane %v467, %v657
        %vm660 = vcmask 15360
        %v662 = vsel %vm660, %v653, 0
        %vm664 = vcmask 1041408
        %v666 = vsel %vm664, %v466, 0
        %668 = vmatprep.subr.mxu0 0.0
        %669 = vmatpush1.msra.mxu0 %v666
        %670 = vmatprep.subr.mxu0 0.0
        %671 = vmatpush1.msra.mxu0 0.0
        %672 = vmatprep.subr.mxu0 0.0
        %673 = vmatpush1.msra.mxu0 0.0
        %674 = vmatprep.subr.mxu0 0.0
        %675 = vmatpush1.msra.mxu0 0.0
        %676 = vmatprep.subr.mxu0 0.0
        %677 = vmatpush1.msra.mxu0 0.0
        %678 = vmatprep.subr.mxu0 0.0
        %679 = vmatpush1.msra.mxu0 0.0
        %680 = vmatprep.subr.mxu0 0.0
        %681 = vmatpush1.msra.mxu0 0.0
        %682 = vmatprep.subr.mxu0 0.0
        %683 = vmatpush1.msra.mxu0 0.0
        %684 = vmatprep.subr.mxu0 0.0
        %685 = vmatpush1.msra.mxu0 0.0
        %686 = vmatprep.subr.mxu0 0.0
        %687 = vmatpush1.msra.mxu0 0.0
        %688 = vmatprep.subr.mxu0 0.0
        %689 = vmatpush1.msra.mxu0 0.0
        %690 = vmatprep.subr.mxu0 0.0
        %691 = vmatpush1.msra.mxu0 0.0
        %692 = vmatprep.subr.mxu0 0.0
        %693 = vmatpush1.msra.mxu0 0.0
        %694 = vmatprep.subr.mxu0 0.0
        %695 = vmatpush1.msra.mxu0 0.0
        %696 = vmatprep.subr.mxu0 0.0
        %697 = vmatpush1.msra.mxu0 0.0
        %698 = vmatprep.subr.mxu0 0.0
        %699 = vmatpush1.msra.mxu0 0.0
        %700 = vmatprep.subr.mxu0 0.0
        %701 = vmatpush1.msra.mxu0 0.0
        %702 = vmatprep.subr.mxu0 0.0
        %703 = vmatpush1.msra.mxu0 0.0
        %704 = vmatprep.subr.mxu0 0.0
        %705 = vmatpush1.msra.mxu0 0.0
        %706 = vmatprep.subr.mxu0 0.0
        %707 = vmatpush1.msra.mxu0 0.0
        %708 = vmatprep.subr.mxu0 0.0
        %709 = vmatpush1.msra.mxu0 0.0
        %710 = vmatprep.subr.mxu0 0.0
        %711 = vmatpush1.msra.mxu0 0.0
        %712 = vmatprep.subr.mxu0 0.0
        %713 = vmatpush1.msra.mxu0 0.0
        %714 = vmatprep.subr.mxu0 0.0
        %715 = vmatpush1.msra.mxu0 0.0
        %716 = vmatprep.subr.mxu0 0.0
        %717 = vmatpush1.msra.mxu0 0.0
        %718 = vmatprep.subr.mxu0 0.0
        %719 = vmatpush1.msra.mxu0 0.0
        %720 = vmatprep.subr.mxu0 0.0
        %721 = vmatpush1.msra.mxu0 0.0
        %722 = vmatprep.subr.mxu0 0.0
        %723 = vmatpush1.msra.mxu0 0.0
        %724 = vmatprep.subr.mxu0 0.0
        %725 = vmatpush1.msra.mxu0 0.0
        %726 = vmatprep.subr.mxu0 0.0
        %727 = vmatpush1.msra.mxu0 0.0
        %728 = vmatprep.subr.mxu0 0.0
        %729 = vmatpush1.msra.mxu0 0.0
        %730 = vmatprep.subr.mxu0 0.0
        %731 = vmatpush1.msra.mxu0 0.0
        %732 = vmatprep.mubr.f32.mxu0 0.0
        %733 = vmatmul.mubr.f32.gmra.mrb[0].mxu0 %v662
        %v734 = vpop.f32.mrb[0].mxu0
        %v735 = vadd.f32 %v658, %v734
        %v736 = vpop.f32.mrb[0].mxu0
        %737 = vdwg.mxu0
        %v754 = vlaneseq
        %v755 = vshrl.u32 %v754, 7
        %v756 = vsub.s32 %v491, %v755
        %v757 = vrot.slane %v415, %v756
        %v758 = vlaneseq
        %v759 = vshrl.u32 %v758, 7
        %v760 = vsub.s32 %v496, %v759
        %v761 = vrot.slane %v418, %v760
        %v762 = vsel %vm501, %v761, %v757
        %v763 = vlaneseq
        %v764 = vshrl.u32 %v763, 7
        %v765 = vsub.s32 %v503, %v764
        %v766 = vrot.slane %v421, %v765
        %v767 = vsel %vm508, %v766, %v762
        %v768 = vlaneseq
        %v769 = vshrl.u32 %v768, 7
        %v770 = vsub.s32 %v510, %v769
        %v771 = vrot.slane %v424, %v770
        %v772 = vsel %vm515, %v771, %v767
        %v773 = vlaneseq
        %v774 = vshrl.u32 %v773, 7
        %v775 = vsub.s32 %v491, %v774
        %v776 = vrot.slane %v427, %v775
        %v777 = vlaneseq
        %v778 = vshrl.u32 %v777, 7
        %v779 = vsub.s32 %v496, %v778
        %v780 = vrot.slane %v430, %v779
        %v781 = vsel %vm501, %v780, %v776
        %v782 = vlaneseq
        %v783 = vshrl.u32 %v782, 7
        %v784 = vsub.s32 %v503, %v783
        %v785 = vrot.slane %v433, %v784
        %v786 = vsel %vm508, %v785, %v781
        %v787 = vlaneseq
        %v788 = vshrl.u32 %v787, 7
        %v789 = vsub.s32 %v510, %v788
        %v790 = vrot.slane %v436, %v789
        %v791 = vsel %vm515, %v790, %v786
        %v792 = vlaneseq
        %v793 = vshrl.u32 %v792, 7
        %v794 = vsub.s32 %v491, %v793
        %v795 = vrot.slane %v439, %v794
        %v796 = vlaneseq
        %v797 = vshrl.u32 %v796, 7
        %v798 = vsub.s32 %v496, %v797
        %v799 = vrot.slane %v442, %v798
        %v800 = vsel %vm501, %v799, %v795
        %v801 = vlaneseq
        %v802 = vshrl.u32 %v801, 7
        %v803 = vsub.s32 %v503, %v802
        %v804 = vrot.slane %v445, %v803
        %v805 = vsel %vm508, %v804, %v800
        %v806 = vlaneseq
        %v807 = vshrl.u32 %v806, 7
        %v808 = vsub.s32 %v510, %v807
        %v809 = vrot.slane %v448, %v808
        %v810 = vsel %vm515, %v809, %v805
        %v811 = vlaneseq
        %v812 = vshrl.u32 %v811, 7
        %v813 = vsub.s32 %v491, %v812
        %v814 = vrot.slane %v451, %v813
        %v815 = vlaneseq
        %v816 = vshrl.u32 %v815, 7
        %v817 = vsub.s32 %v496, %v816
        %v818 = vrot.slane %v454, %v817
        %v819 = vsel %vm501, %v818, %v814
        %v820 = vlaneseq
        %v821 = vshrl.u32 %v820, 7
        %v822 = vsub.s32 %v503, %v821
        %v823 = vrot.slane %v457, %v822
        %v824 = vsel %vm508, %v823, %v819
        %v825 = vlaneseq
        %v826 = vshrl.u32 %v825, 7
        %v827 = vsub.s32 %v510, %v826
        %v828 = vrot.slane %v460, %v827
        %v829 = vsel %vm515, %v828, %v824
        %v830 = vsel %vm574, %v791, %v772
        %v831 = vsel %vm576, %v810, %v830
        %v832 = vsel %vm578, %v829, %v831
        %v833 = vsel %vm580, %v832, 0
        %835 = vmatprep.subr.mxu0 0.0
        %836 = vmatpush1.msra.mxu0 %v461
        %837 = vmatprep.subr.mxu0 0.0
        %838 = vmatpush1.msra.mxu0 %v462
        %839 = vmatprep.subr.mxu0 0.0
        %840 = vmatpush1.msra.mxu0 %v463
        %841 = vmatprep.subr.mxu0 0.0
        %842 = vmatpush1.msra.mxu0 %v464
        %843 = vmatprep.subr.mxu0 0.0
        %844 = vmatpush1.msra.mxu0 0.0
        %845 = vmatprep.subr.mxu0 0.0
        %846 = vmatpush1.msra.mxu0 0.0
        %847 = vmatprep.subr.mxu0 0.0
        %848 = vmatpush1.msra.mxu0 0.0
        %849 = vmatprep.subr.mxu0 0.0
        %850 = vmatpush1.msra.mxu0 0.0
        %851 = vmatprep.subr.mxu0 0.0
        %852 = vmatpush1.msra.mxu0 0.0
        %853 = vmatprep.subr.mxu0 0.0
        %854 = vmatpush1.msra.mxu0 0.0
        %855 = vmatprep.subr.mxu0 0.0
        %856 = vmatpush1.msra.mxu0 0.0
        %857 = vmatprep.subr.mxu0 0.0
        %858 = vmatpush1.msra.mxu0 0.0
        %859 = vmatprep.subr.mxu0 0.0
        %860 = vmatpush1.msra.mxu0 0.0
        %861 = vmatprep.subr.mxu0 0.0
        %862 = vmatpush1.msra.mxu0 0.0
        %863 = vmatprep.subr.mxu0 0.0
        %864 = vmatpush1.msra.mxu0 0.0
        %865 = vmatprep.subr.mxu0 0.0
        %866 = vmatpush1.msra.mxu0 0.0
        %867 = vmatprep.subr.mxu0 0.0
        %868 = vmatpush1.msra.mxu0 0.0
        %869 = vmatprep.subr.mxu0 0.0
        %870 = vmatpush1.msra.mxu0 0.0
        %871 = vmatprep.subr.mxu0 0.0
        %872 = vmatpush1.msra.mxu0 0.0
        %873 = vmatprep.subr.mxu0 0.0
        %874 = vmatpush1.msra.mxu0 0.0
        %875 = vmatprep.subr.mxu0 0.0
        %876 = vmatpush1.msra.mxu0 0.0
        %877 = vmatprep.subr.mxu0 0.0
        %878 = vmatpush1.msra.mxu0 0.0
        %879 = vmatprep.subr.mxu0 0.0
        %880 = vmatpush1.msra.mxu0 0.0
        %881 = vmatprep.subr.mxu0 0.0
        %882 = vmatpush1.msra.mxu0 0.0
        %883 = vmatprep.subr.mxu0 0.0
        %884 = vmatpush1.msra.mxu0 0.0
        %885 = vmatprep.subr.mxu0 0.0
        %886 = vmatpush1.msra.mxu0 0.0
        %887 = vmatprep.subr.mxu0 0.0
        %888 = vmatpush1.msra.mxu0 0.0
        %889 = vmatprep.subr.mxu0 0.0
        %890 = vmatpush1.msra.mxu0 0.0
        %891 = vmatprep.subr.mxu0 0.0
        %892 = vmatpush1.msra.mxu0 0.0
        %893 = vmatprep.subr.mxu0 0.0
        %894 = vmatpush1.msra.mxu0 0.0
        %895 = vmatprep.subr.mxu0 0.0
        %896 = vmatpush1.msra.mxu0 0.0
        %897 = vmatprep.subr.mxu0 0.0
        %898 = vmatpush1.msra.mxu0 0.0
        %899 = vmatprep.mubr.f32.mxu0 0.0
        %900 = vmatmul.mubr.f32.gmra.mrb[0].mxu0 %v833
        %v901 = vpop.f32.mrb[0].mxu0
        %v902 = vadd.f32 %v472, %v901
        %v903 = vpop.f32.mrb[0].mxu0
        %904 = vdwg.mxu0
        %v905 = vmax.f32 %v902, 0.0
        %v907 = vsel %vm660, %v905, 0
        %909 = vmatprep.subr.mxu0 0.0
        %910 = vmatpush1.msra.mxu0 %v666
        %911 = vmatprep.subr.mxu0 0.0
        %912 = vmatpush1.msra.mxu0 0.0
        %913 = vmatprep.subr.mxu0 0.0
        %914 = vmatpush1.msra.mxu0 0.0
        %915 = vmatprep.subr.mxu0 0.0
        %916 = vmatpush1.msra.mxu0 0.0
        %917 = vmatprep.subr.mxu0 0.0
        %918 = vmatpush1.msra.mxu0 0.0
        %919 = vmatprep.subr.mxu0 0.0
        %920 = vmatpush1.msra.mxu0 0.0
        %921 = vmatprep.subr.mxu0 0.0
        %922 = vmatpush1.msra.mxu0 0.0
        %923 = vmatprep.subr.mxu0 0.0
        %924 = vmatpush1.msra.mxu0 0.0
        %925 = vmatprep.subr.mxu0 0.0
        %926 = vmatpush1.msra.mxu0 0.0
        %927 = vmatprep.subr.mxu0 0.0
        %928 = vmatpush1.msra.mxu0 0.0
        %929 = vmatprep.subr.mxu0 0.0
        %930 = vmatpush1.msra.mxu0 0.0
        %931 = vmatprep.subr.mxu0 0.0
        %932 = vmatpush1.msra.mxu0 0.0
        %933 = vmatprep.subr.mxu0 0.0
        %934 = vmatpush1.msra.mxu0 0.0
        %935 = vmatprep.subr.mxu0 0.0
        %936 = vmatpush1.msra.mxu0 0.0
        %937 = vmatprep.subr.mxu0 0.0
        %938 = vmatpush1.msra.mxu0 0.0
        %939 = vmatprep.subr.mxu0 0.0
        %940 = vmatpush1.msra.mxu0 0.0
        %941 = vmatprep.subr.mxu0 0.0
        %942 = vmatpush1.msra.mxu0 0.0
        %943 = vmatprep.subr.mxu0 0.0
        %944 = vmatpush1.msra.mxu0 0.0
        %945 = vmatprep.subr.mxu0 0.0
        %946 = vmatpush1.msra.mxu0 0.0
        %947 = vmatprep.subr.mxu0 0.0
        %948 = vmatpush1.msra.mxu0 0.0
        %949 = vmatprep.subr.mxu0 0.0
        %950 = vmatpush1.msra.mxu0 0.0
        %951 = vmatprep.subr.mxu0 0.0
        %952 = vmatpush1.msra.mxu0 0.0
        %953 = vmatprep.subr.mxu0 0.0
        %954 = vmatpush1.msra.mxu0 0.0
        %955 = vmatprep.subr.mxu0 0.0
        %956 = vmatpush1.msra.mxu0 0.0
        %957 = vmatprep.subr.mxu0 0.0
        %958 = vmatpush1.msra.mxu0 0.0
        %959 = vmatprep.subr.mxu0 0.0
        %960 = vmatpush1.msra.mxu0 0.0
        %961 = vmatprep.subr.mxu0 0.0
        %962 = vmatpush1.msra.mxu0 0.0
        %963 = vmatprep.subr.mxu0 0.0
        %964 = vmatpush1.msra.mxu0 0.0
        %965 = vmatprep.subr.mxu0 0.0
        %966 = vmatpush1.msra.mxu0 0.0
        %967 = vmatprep.subr.mxu0 0.0
        %968 = vmatpush1.msra.mxu0 0.0
        %969 = vmatprep.subr.mxu0 0.0
        %970 = vmatpush1.msra.mxu0 0.0
        %971 = vmatprep.subr.mxu0 0.0
        %972 = vmatpush1.msra.mxu0 0.0
        %973 = vmatprep.mubr.f32.mxu0 0.0
        %974 = vmatmul.mubr.f32.gmra.mrb[0].mxu0 %v907
        %v975 = vpop.f32.mrb[0].mxu0
        %v976 = vadd.f32 %v658, %v975
        %v977 = vpop.f32.mrb[0].mxu0
        %978 = vdwg.mxu0
        %v979 = vadd.f32 %v735, %v976
        %v980 = vxor.u32 %v979, 2147483648
        %v981 = vmul.f32 %v980, 1.442695
        %v982 = vpow.pop %v981
        %v983 = vadd.f32 %v982, 1.0
        %v984 = vrcp.pop %v983
        %v985 = vmul.f32 1.0, %v984
        %v986 = vlaneseq
        %v987 = vshrl.u32 %v986, 7
        %v988 = vsub.s32 0, %v987
        %v989 = vrot.slane %v985, %v988
        %991 = vbcast.lane.b32.xlu0 %v989, 256
        %v992 = vpop.permute.xlu0 %991
        %s994 = sor.u32 256, 8
        %995 = vbcast.lane.b32.xlu0 %v989, %s994
        %v996 = vpop.permute.xlu0 %995
        %s998 = sor.u32 256, 16
        %999 = vbcast.lane.b32.xlu0 %v989, %s998
        %v1000 = vpop.permute.xlu0 %999
        %s1002 = sor.u32 256, 24
        %1003 = vbcast.lane.b32.xlu0 %v989, %s1002
        %v1004 = vpop.permute.xlu0 %1003
        %v1005 = vlaneseq
        %v1006 = vshrl.u32 %v1005, 7
        %v1007 = vsub.s32 1, %v1006
        %v1008 = vrot.slane %v985, %v1007
        %1010 = vbcast.lane.b32.xlu0 %v1008, 256
        %v1011 = vpop.permute.xlu0 %1010
        %s1013 = sor.u32 256, 8
        %1014 = vbcast.lane.b32.xlu0 %v1008, %s1013
        %v1015 = vpop.permute.xlu0 %1014
        %s1017 = sor.u32 256, 16
        %1018 = vbcast.lane.b32.xlu0 %v1008, %s1017
        %v1019 = vpop.permute.xlu0 %1018
        %s1021 = sor.u32 256, 24
        %1022 = vbcast.lane.b32.xlu0 %v1008, %s1021
        %v1023 = vpop.permute.xlu0 %1022
        %v1024 = vlaneseq
        %v1025 = vshrl.u32 %v1024, 7
        %v1026 = vsub.s32 2, %v1025
        %v1027 = vrot.slane %v985, %v1026
        %1029 = vbcast.lane.b32.xlu0 %v1027, 256
        %v1030 = vpop.permute.xlu0 %1029
        %s1032 = sor.u32 256, 8
        %1033 = vbcast.lane.b32.xlu0 %v1027, %s1032
        %v1034 = vpop.permute.xlu0 %1033
        %s1036 = sor.u32 256, 16
        %1037 = vbcast.lane.b32.xlu0 %v1027, %s1036
        %v1038 = vpop.permute.xlu0 %1037
        %s1040 = sor.u32 256, 24
        %1041 = vbcast.lane.b32.xlu0 %v1027, %s1040
        %v1042 = vpop.permute.xlu0 %1041
        %v1043 = vlaneseq
        %v1044 = vshrl.u32 %v1043, 7
        %v1045 = vsub.s32 3, %v1044
        %v1046 = vrot.slane %v985, %v1045
        %1048 = vbcast.lane.b32.xlu0 %v1046, 256
        %v1049 = vpop.permute.xlu0 %1048
        %s1051 = sor.u32 256, 8
        %1052 = vbcast.lane.b32.xlu0 %v1046, %s1051
        %v1053 = vpop.permute.xlu0 %1052
        %s1055 = sor.u32 256, 16
        %1056 = vbcast.lane.b32.xlu0 %v1046, %s1055
        %v1057 = vpop.permute.xlu0 %1056
        %s1059 = sor.u32 256, 24
        %1060 = vbcast.lane.b32.xlu0 %v1046, %s1059
        %v1061 = vpop.permute.xlu0 %1060
        %v1062 = vmul.f32 %v316, %v992
        %v1063 = vmul.f32 %v317, %v992
        %v1064 = vmul.f32 %v318, %v996
        %v1065 = vmul.f32 %v319, %v996
        %v1066 = vmul.f32 %v320, %v1000
        %v1067 = vmul.f32 %v321, %v1000
        %v1068 = vmul.f32 %v322, %v1004
        %v1069 = vmul.f32 %v323, %v1004
        %v1070 = vmul.f32 %v324, %v1011
        %v1071 = vmul.f32 %v325, %v1011
        %v1072 = vmul.f32 %v326, %v1015
        %v1073 = vmul.f32 %v327, %v1015
        %v1074 = vmul.f32 %v328, %v1019
        %v1075 = vmul.f32 %v329, %v1019
        %v1076 = vmul.f32 %v330, %v1023
        %v1077 = vmul.f32 %v331, %v1023
        %v1078 = vmul.f32 %v332, %v1030
        %v1079 = vmul.f32 %v333, %v1030
        %v1080 = vmul.f32 %v334, %v1034
        %v1081 = vmul.f32 %v335, %v1034
        %v1082 = vmul.f32 %v336, %v1038
        %v1083 = vmul.f32 %v337, %v1038
        %v1084 = vmul.f32 %v338, %v1042
        %v1085 = vmul.f32 %v339, %v1042
        %v1086 = vmul.f32 %v340, %v1049
        %v1087 = vmul.f32 %v341, %v1049
        %v1088 = vmul.f32 %v342, %v1053
        %v1089 = vmul.f32 %v343, %v1053
        %v1090 = vmul.f32 %v344, %v1057
        %v1091 = vmul.f32 %v345, %v1057
        %v1092 = vmul.f32 %v346, %v1061
        %v1093 = vmul.f32 %v347, %v1061
        %v1094 = vadd.f32 %v1062, %v1064
        %v1095 = vadd.f32 %v1094, %v1066
        %v1096 = vadd.f32 %v1095, %v1068
        %v1097 = vrot.slane %v1096, 4
        %v1098 = vadd.f32 %v1096, %v1097
        %v1099 = vrot.slane %v1098, 2
        %v1100 = vadd.f32 %v1098, %v1099
        %v1101 = vrot.slane %v1100, 1
        %v1102 = vadd.f32 %v1100, %v1101
        %v1103 = vadd.f32 %v1063, %v1065
        %v1104 = vadd.f32 %v1103, %v1067
        %v1105 = vadd.f32 %v1104, %v1069
        %v1106 = vrot.slane %v1105, 4
        %v1107 = vadd.f32 %v1105, %v1106
        %v1108 = vrot.slane %v1107, 2
        %v1109 = vadd.f32 %v1107, %v1108
        %v1110 = vrot.slane %v1109, 1
        %v1111 = vadd.f32 %v1109, %v1110
        %v1112 = vadd.f32 %v1070, %v1072
        %v1113 = vadd.f32 %v1112, %v1074
        %v1114 = vadd.f32 %v1113, %v1076
        %v1115 = vrot.slane %v1114, 4
        %v1116 = vadd.f32 %v1114, %v1115
        %v1117 = vrot.slane %v1116, 2
        %v1118 = vadd.f32 %v1116, %v1117
        %v1119 = vrot.slane %v1118, 1
        %v1120 = vadd.f32 %v1118, %v1119
        %v1121 = vadd.f32 %v1071, %v1073
        %v1122 = vadd.f32 %v1121, %v1075
        %v1123 = vadd.f32 %v1122, %v1077
        %v1124 = vrot.slane %v1123, 4
        %v1125 = vadd.f32 %v1123, %v1124
        %v1126 = vrot.slane %v1125, 2
        %v1127 = vadd.f32 %v1125, %v1126
        %v1128 = vrot.slane %v1127, 1
        %v1129 = vadd.f32 %v1127, %v1128
        %v1130 = vadd.f32 %v1078, %v1080
        %v1131 = vadd.f32 %v1130, %v1082
        %v1132 = vadd.f32 %v1131, %v1084
        %v1133 = vrot.slane %v1132, 4
        %v1134 = vadd.f32 %v1132, %v1133
        %v1135 = vrot.slane %v1134, 2
        %v1136 = vadd.f32 %v1134, %v1135
        %v1137 = vrot.slane %v1136, 1
        %v1138 = vadd.f32 %v1136, %v1137
        %v1139 = vadd.f32 %v1079, %v1081
        %v1140 = vadd.f32 %v1139, %v1083
        %v1141 = vadd.f32 %v1140, %v1085
        %v1142 = vrot.slane %v1141, 4
        %v1143 = vadd.f32 %v1141, %v1142
        %v1144 = vrot.slane %v1143, 2
        %v1145 = vadd.f32 %v1143, %v1144
        %v1146 = vrot.slane %v1145, 1
        %v1147 = vadd.f32 %v1145, %v1146
        %v1148 = vadd.f32 %v1086, %v1088
        %v1149 = vadd.f32 %v1148, %v1090
        %v1150 = vadd.f32 %v1149, %v1092
        %v1151 = vrot.slane %v1150, 4
        %v1152 = vadd.f32 %v1150, %v1151
        %v1153 = vrot.slane %v1152, 2
        %v1154 = vadd.f32 %v1152, %v1153
        %v1155 = vrot.slane %v1154, 1
        %v1156 = vadd.f32 %v1154, %v1155
        %v1157 = vadd.f32 %v1087, %v1089
        %v1158 = vadd.f32 %v1157, %v1091
        %v1159 = vadd.f32 %v1158, %v1093
        %v1160 = vrot.slane %v1159, 4
        %v1161 = vadd.f32 %v1159, %v1160
        %v1162 = vrot.slane %v1161, 2
        %v1163 = vadd.f32 %v1161, %v1162
        %v1164 = vrot.slane %v1163, 1
        %v1165 = vadd.f32 %v1163, %v1164
        %v1166 = vrcp.pop 32.0
        %v1167 = vmul.f32 %v1102, %v1166
        %v1168 = vmul.f32 %v1111, %v1166
        %v1169 = vmul.f32 %v1120, %v1166
        %v1170 = vmul.f32 %v1129, %v1166
        %v1171 = vmul.f32 %v1138, %v1166
        %v1172 = vmul.f32 %v1147, %v1166
        %v1173 = vmul.f32 %v1156, %v1166
        %v1174 = vmul.f32 %v1165, %v1166
        %v1175 = vmax.f32 %v1062, %v1064
        %v1176 = vmax.f32 %v1175, %v1066
        %v1177 = vmax.f32 %v1176, %v1068
        %v1178 = vrot.slane %v1177, 4
        %v1179 = vmax.f32 %v1177, %v1178
        %v1180 = vrot.slane %v1179, 2
        %v1181 = vmax.f32 %v1179, %v1180
        %v1182 = vrot.slane %v1181, 1
        %v1183 = vmax.f32 %v1181, %v1182
        %v1184 = vmax.f32 %v1063, %v1065
        %v1185 = vmax.f32 %v1184, %v1067
        %v1186 = vmax.f32 %v1185, %v1069
        %v1187 = vrot.slane %v1186, 4
        %v1188 = vmax.f32 %v1186, %v1187
        %v1189 = vrot.slane %v1188, 2
        %v1190 = vmax.f32 %v1188, %v1189
        %v1191 = vrot.slane %v1190, 1
        %v1192 = vmax.f32 %v1190, %v1191
        %v1193 = vmax.f32 %v1070, %v1072
        %v1194 = vmax.f32 %v1193, %v1074
        %v1195 = vmax.f32 %v1194, %v1076
        %v1196 = vrot.slane %v1195, 4
        %v1197 = vmax.f32 %v1195, %v1196
        %v1198 = vrot.slane %v1197, 2
        %v1199 = vmax.f32 %v1197, %v1198
        %v1200 = vrot.slane %v1199, 1
        %v1201 = vmax.f32 %v1199, %v1200
        %v1202 = vmax.f32 %v1071, %v1073
        %v1203 = vmax.f32 %v1202, %v1075
        %v1204 = vmax.f32 %v1203, %v1077
        %v1205 = vrot.slane %v1204, 4
        %v1206 = vmax.f32 %v1204, %v1205
        %v1207 = vrot.slane %v1206, 2
        %v1208 = vmax.f32 %v1206, %v1207
        %v1209 = vrot.slane %v1208, 1
        %v1210 = vmax.f32 %v1208, %v1209
        %v1211 = vmax.f32 %v1078, %v1080
        %v1212 = vmax.f32 %v1211, %v1082
        %v1213 = vmax.f32 %v1212, %v1084
        %v1214 = vrot.slane %v1213, 4
        %v1215 = vmax.f32 %v1213, %v1214
        %v1216 = vrot.slane %v1215, 2
        %v1217 = vmax.f32 %v1215, %v1216
        %v1218 = vrot.slane %v1217, 1
        %v1219 = vmax.f32 %v1217, %v1218
        %v1220 = vmax.f32 %v1079, %v1081
        %v1221 = vmax.f32 %v1220, %v1083
        %v1222 = vmax.f32 %v1221, %v1085
        %v1223 = vrot.slane %v1222, 4
        %v1224 = vmax.f32 %v1222, %v1223
        %v1225 = vrot.slane %v1224, 2
        %v1226 = vmax.f32 %v1224, %v1225
        %v1227 = vrot.slane %v1226, 1
        %v1228 = vmax.f32 %v1226, %v1227
        %v1229 = vmax.f32 %v1086, %v1088
        %v1230 = vmax.f32 %v1229, %v1090
        %v1231 = vmax.f32 %v1230, %v1092
        %v1232 = vrot.slane %v1231, 4
        %v1233 = vmax.f32 %v1231, %v1232
        %v1234 = vrot.slane %v1233, 2
        %v1235 = vmax.f32 %v1233, %v1234
        %v1236 = vrot.slane %v1235, 1
        %v1237 = vmax.f32 %v1235, %v1236
        %v1238 = vmax.f32 %v1087, %v1089
        %v1239 = vmax.f32 %v1238, %v1091
        %v1240 = vmax.f32 %v1239, %v1093
        %v1241 = vrot.slane %v1240, 4
        %v1242 = vmax.f32 %v1240, %v1241
        %v1243 = vrot.slane %v1242, 2
        %v1244 = vmax.f32 %v1242, %v1243
        %v1245 = vrot.slane %v1244, 1
        %v1246 = vmax.f32 %v1244, %v1245
        %v1247 = vld [vmem:[#allocation6] sm:$0xff]
        %v1248 = vld [vmem:[#allocation6 + $0x8] sm:$0xff]
        %v1249 = vld [vmem:[#allocation6 + $0x10] sm:$0xff]
        %v1250 = vld [vmem:[#allocation6 + $0x18] sm:$0xff]
        %v1251 = vld [vmem:[#allocation6 + $0x20] sm:$0xff]
        %v1252 = vld [vmem:[#allocation6 + $0x28] sm:$0xff]
        %v1253 = vld [vmem:[#allocation6 + $0x30] sm:$0xff]
        %v1254 = vld [vmem:[#allocation6 + $0x38] sm:$0xff]
        %v1255 = vld [vmem:[#allocation6 + $0x40] sm:$0xff]
        %v1256 = vld [vmem:[#allocation6 + $0x48] sm:$0xff]
        %v1257 = vld [vmem:[#allocation6 + $0x50] sm:$0xff]
        %v1258 = vld [vmem:[#allocation6 + $0x58] sm:$0xff]
        %v1259 = vld [vmem:[#allocation6 + $0x60] sm:$0xff]
        %v1260 = vld [vmem:[#allocation6 + $0x68] sm:$0xff]
        %v1261 = vld [vmem:[#allocation6 + $0x70] sm:$0xff]
        %v1262 = vld [vmem:[#allocation6 + $0x78] sm:$0xff]
        %v1263 = vld [vmem:[#allocation6 + $0x80] sm:$0xff]
        %v1264 = vld [vmem:[#allocation6 + $0x88] sm:$0xff]
        %v1265 = vld [vmem:[#allocation6 + $0x90] sm:$0xff]
        %v1266 = vld [vmem:[#allocation6 + $0x98] sm:$0xff]
        %v1267 = vld [vmem:[#allocation6 + $0xa0] sm:$0xff]
        %v1268 = vld [vmem:[#allocation6 + $0xa8] sm:$0xff]
        %v1269 = vld [vmem:[#allocation6 + $0xb0] sm:$0xff]
        %v1270 = vld [vmem:[#allocation6 + $0xb8] sm:$0xff]
        %v1271 = vld [vmem:[#allocation6 + $0xc0] sm:$0xff]
        %v1272 = vld [vmem:[#allocation6 + $0xc8] sm:$0xff]
        %v1273 = vld [vmem:[#allocation6 + $0xd0] sm:$0xff]
        %v1274 = vld [vmem:[#allocation6 + $0xd8] sm:$0xff]
        %v1275 = vld [vmem:[#allocation6 + $0xe0] sm:$0xff]
        %v1276 = vld [vmem:[#allocation6 + $0xe8] sm:$0xff]
        %v1277 = vld [vmem:[#allocation6 + $0xf0] sm:$0xff]
        %v1278 = vld [vmem:[#allocation6 + $0xf8] sm:$0xff]
        %v1279 = vld [vmem:[#allocation6 + $0x100] sm:$0xff]
        %v1280 = vld [vmem:[#allocation6 + $0x108] sm:$0xff]
        %v1281 = vld [vmem:[#allocation6 + $0x110] sm:$0xff]
        %v1282 = vld [vmem:[#allocation6 + $0x118] sm:$0xff]
        %v1283 = vld [vmem:[#allocation6 + $0x120] sm:$0xff]
        %v1284 = vld [vmem:[#allocation6 + $0x128] sm:$0xff]
        %v1285 = vld [vmem:[#allocation6 + $0x130] sm:$0xff]
        %v1286 = vld [vmem:[#allocation6 + $0x138] sm:$0xff]
        %v1287 = vld [vmem:[#allocation6 + $0x140] sm:$0xff]
        %v1288 = vld [vmem:[#allocation6 + $0x148] sm:$0xff]
        %v1289 = vld [vmem:[#allocation6 + $0x150] sm:$0xff]
        %v1290 = vld [vmem:[#allocation6 + $0x158] sm:$0xff]
        %v1291 = vld [vmem:[#allocation6 + $0x160] sm:$0xff]
        %v1292 = vld [vmem:[#allocation6 + $0x168] sm:$0xff]
        %v1293 = vld [vmem:[#allocation6 + $0x170] sm:$0xff]
        %v1294 = vld [vmem:[#allocation6 + $0x178] sm:$0xff]
        %v1295 = vld [vmem:[#allocation6 + $0x180] sm:$0xff]
        %v1296 = vld [vmem:[#allocation6 + $0x188] sm:$0xff]
        %v1297 = vld [vmem:[#allocation6 + $0x190] sm:$0xff]
        %v1298 = vld [vmem:[#allocation6 + $0x198] sm:$0xff]
        %v1299 = vld [vmem:[#allocation6 + $0x1a0] sm:$0xff]
        %v1300 = vld [vmem:[#allocation6 + $0x1a8] sm:$0xff]
        %v1301 = vld [vmem:[#allocation6 + $0x1b0] sm:$0xff]
        %v1302 = vld [vmem:[#allocation6 + $0x1b8] sm:$0xff]
        %v1303 = vld [vmem:[#allocation6 + $0x1c0] sm:$0xff]
        %v1304 = vld [vmem:[#allocation6 + $0x1c8] sm:$0xff]
        %v1305 = vld [vmem:[#allocation6 + $0x1d0] sm:$0xff]
        %v1306 = vld [vmem:[#allocation6 + $0x1d8] sm:$0xff]
        %v1307 = vld [vmem:[#allocation6 + $0x1e0] sm:$0xff]
        %v1308 = vld [vmem:[#allocation6 + $0x1e8] sm:$0xff]
        %v1309 = vld [vmem:[#allocation6 + $0x1f0] sm:$0xff]
        %v1310 = vld [vmem:[#allocation6 + $0x1f8] sm:$0xff]
        %s1311 = scalar_lea.vmem [#allocation6], 512
        %v1312 = vld [vmem:[%s1311] sm:$0xff]
        %v1313 = vld [vmem:[%s1311 + $0x8] sm:$0xff]
        %v1314 = vld [vmem:[%s1311 + $0x10] sm:$0xff]
        %v1315 = vld [vmem:[%s1311 + $0x18] sm:$0xff]
        %v1316 = vld [vmem:[%s1311 + $0x20] sm:$0xff]
        %v1317 = vld [vmem:[%s1311 + $0x28] sm:$0xff]
        %v1318 = vld [vmem:[%s1311 + $0x30] sm:$0xff]
        %v1319 = vld [vmem:[%s1311 + $0x38] sm:$0xff]
        %v1320 = vld [vmem:[%s1311 + $0x40] sm:$0xff]
        %v1321 = vld [vmem:[%s1311 + $0x48] sm:$0xff]
        %v1322 = vld [vmem:[%s1311 + $0x50] sm:$0xff]
        %v1323 = vld [vmem:[%s1311 + $0x58] sm:$0xff]
        %v1324 = vld [vmem:[%s1311 + $0x60] sm:$0xff]
        %v1325 = vld [vmem:[%s1311 + $0x68] sm:$0xff]
        %v1326 = vld [vmem:[%s1311 + $0x70] sm:$0xff]
        %v1327 = vld [vmem:[%s1311 + $0x78] sm:$0xff]
        %v1328 = vld [vmem:[%s1311 + $0x80] sm:$0xff]
        %v1329 = vld [vmem:[%s1311 + $0x88] sm:$0xff]
        %v1330 = vld [vmem:[%s1311 + $0x90] sm:$0xff]
        %v1331 = vld [vmem:[%s1311 + $0x98] sm:$0xff]
        %v1332 = vld [vmem:[%s1311 + $0xa0] sm:$0xff]
        %v1333 = vld [vmem:[%s1311 + $0xa8] sm:$0xff]
        %v1334 = vld [vmem:[%s1311 + $0xb0] sm:$0xff]
        %v1335 = vld [vmem:[%s1311 + $0xb8] sm:$0xff]
        %v1336 = vld [vmem:[%s1311 + $0xc0] sm:$0xff]
        %v1337 = vld [vmem:[%s1311 + $0xc8] sm:$0xff]
        %v1338 = vld [vmem:[%s1311 + $0xd0] sm:$0xff]
        %v1339 = vld [vmem:[%s1311 + $0xd8] sm:$0xff]
        %v1340 = vld [vmem:[%s1311 + $0xe0] sm:$0xff]
        %v1341 = vld [vmem:[%s1311 + $0xe8] sm:$0xff]
        %v1342 = vld [vmem:[%s1311 + $0xf0] sm:$0xff]
        %v1343 = vld [vmem:[%s1311 + $0xf8] sm:$0xff]
        %v1344 = vld [vmem:[%s1311 + $0x100] sm:$0xff]
        %v1345 = vld [vmem:[%s1311 + $0x108] sm:$0xff]
        %v1346 = vld [vmem:[%s1311 + $0x110] sm:$0xff]
        %v1347 = vld [vmem:[%s1311 + $0x118] sm:$0xff]
        %v1348 = vld [vmem:[%s1311 + $0x120] sm:$0xff]
        %v1349 = vld [vmem:[%s1311 + $0x128] sm:$0xff]
        %v1350 = vld [vmem:[%s1311 + $0x130] sm:$0xff]
        %v1351 = vld [vmem:[%s1311 + $0x138] sm:$0xff]
        %v1352 = vld [vmem:[%s1311 + $0x140] sm:$0xff]
        %v1353 = vld [vmem:[%s1311 + $0x148] sm:$0xff]
        %v1354 = vld [vmem:[%s1311 + $0x150] sm:$0xff]
        %v1355 = vld [vmem:[%s1311 + $0x158] sm:$0xff]
        %v1356 = vld [vmem:[%s1311 + $0x160] sm:$0xff]
        %v1357 = vld [vmem:[%s1311 + $0x168] sm:$0xff]
        %v1358 = vld [vmem:[%s1311 + $0x170] sm:$0xff]
        %v1359 = vld [vmem:[%s1311 + $0x178] sm:$0xff]
        %v1360 = vld [vmem:[%s1311 + $0x180] sm:$0xff]
        %v1361 = vld [vmem:[%s1311 + $0x188] sm:$0xff]
        %v1362 = vld [vmem:[%s1311 + $0x190] sm:$0xff]
        %v1363 = vld [vmem:[%s1311 + $0x198] sm:$0xff]
        %v1364 = vld [vmem:[%s1311 + $0x1a0] sm:$0xff]
        %v1365 = vld [vmem:[%s1311 + $0x1a8] sm:$0xff]
        %v1366 = vld [vmem:[%s1311 + $0x1b0] sm:$0xff]
        %v1367 = vld [vmem:[%s1311 + $0x1b8] sm:$0xff]
        %v1368 = vld [vmem:[%s1311 + $0x1c0] sm:$0xff]
        %v1369 = vld [vmem:[%s1311 + $0x1c8] sm:$0xff]
        %v1370 = vld [vmem:[%s1311 + $0x1d0] sm:$0xff]
        %v1371 = vld [vmem:[%s1311 + $0x1d8] sm:$0xff]
        %v1372 = vld [vmem:[%s1311 + $0x1e0] sm:$0xff]
        %v1373 = vld [vmem:[%s1311 + $0x1e8] sm:$0xff]
        %v1374 = vld [vmem:[%s1311 + $0x1f0] sm:$0xff]
        %v1375 = vld [vmem:[%s1311 + $0x1f8] sm:$0xff]
        %v1384 = vsel %vm574, %v1201, %v1183
        %v1385 = vsel %vm576, %v1219, %v1384
        %v1386 = vsel %vm578, %v1237, %v1385
        %v1387 = vsel %vm574, %v1210, %v1192
        %v1388 = vsel %vm576, %v1228, %v1387
        %v1389 = vsel %vm578, %v1246, %v1388
        %1392 = vmatprep.subr.mxu0 %v1313
        %1393 = vmatpush1.msra.mxu0 %v1312
        %1394 = vmatprep.subr.mxu0 %v1315
        %1395 = vmatpush1.msra.mxu0 %v1314
        %1396 = vmatprep.subr.mxu0 %v1317
        %1397 = vmatpush1.msra.mxu0 %v1316
        %1398 = vmatprep.subr.mxu0 %v1319
        %1399 = vmatpush1.msra.mxu0 %v1318
        %1400 = vmatprep.subr.mxu0 %v1321
        %1401 = vmatpush1.msra.mxu0 %v1320
        %1402 = vmatprep.subr.mxu0 %v1323
        %1403 = vmatpush1.msra.mxu0 %v1322
        %1404 = vmatprep.subr.mxu0 %v1325
        %1405 = vmatpush1.msra.mxu0 %v1324
        %1406 = vmatprep.subr.mxu0 %v1327
        %1407 = vmatpush1.msra.mxu0 %v1326
        %1408 = vmatprep.subr.mxu0 %v1329
        %1409 = vmatpush1.msra.mxu0 %v1328
        %1410 = vmatprep.subr.mxu0 %v1331
        %1411 = vmatpush1.msra.mxu0 %v1330
        %1412 = vmatprep.subr.mxu0 %v1333
        %1413 = vmatpush1.msra.mxu0 %v1332
        %1414 = vmatprep.subr.mxu0 %v1335
        %1415 = vmatpush1.msra.mxu0 %v1334
        %1416 = vmatprep.subr.mxu0 %v1337
        %1417 = vmatpush1.msra.mxu0 %v1336
        %1418 = vmatprep.subr.mxu0 %v1339
        %1419 = vmatpush1.msra.mxu0 %v1338
        %1420 = vmatprep.subr.mxu0 %v1341
        %1421 = vmatpush1.msra.mxu0 %v1340
        %1422 = vmatprep.subr.mxu0 %v1343
        %1423 = vmatpush1.msra.mxu0 %v1342
        %1424 = vmatprep.subr.mxu0 %v1345
        %1425 = vmatpush1.msra.mxu0 %v1344
        %1426 = vmatprep.subr.mxu0 %v1347
        %1427 = vmatpush1.msra.mxu0 %v1346
        %1428 = vmatprep.subr.mxu0 %v1349
        %1429 = vmatpush1.msra.mxu0 %v1348
        %1430 = vmatprep.subr.mxu0 %v1351
        %1431 = vmatpush1.msra.mxu0 %v1350
        %1432 = vmatprep.subr.mxu0 %v1353
        %1433 = vmatpush1.msra.mxu0 %v1352
        %1434 = vmatprep.subr.mxu0 %v1355
        %1435 = vmatpush1.msra.mxu0 %v1354
        %1436 = vmatprep.subr.mxu0 %v1357
        %1437 = vmatpush1.msra.mxu0 %v1356
        %1438 = vmatprep.subr.mxu0 %v1359
        %1439 = vmatpush1.msra.mxu0 %v1358
        %1440 = vmatprep.subr.mxu0 %v1361
        %1441 = vmatpush1.msra.mxu0 %v1360
        %1442 = vmatprep.subr.mxu0 %v1363
        %1443 = vmatpush1.msra.mxu0 %v1362
        %1444 = vmatprep.subr.mxu0 %v1365
        %1445 = vmatpush1.msra.mxu0 %v1364
        %1446 = vmatprep.subr.mxu0 %v1367
        %1447 = vmatpush1.msra.mxu0 %v1366
        %1448 = vmatprep.subr.mxu0 %v1369
        %1449 = vmatpush1.msra.mxu0 %v1368
        %1450 = vmatprep.subr.mxu0 %v1371
        %1451 = vmatpush1.msra.mxu0 %v1370
        %1452 = vmatprep.subr.mxu0 %v1373
        %1453 = vmatpush1.msra.mxu0 %v1372
        %1454 = vmatprep.subr.mxu0 %v1375
        %1455 = vmatpush1.msra.mxu0 %v1374
        %1456 = vmatprep.mubr.f32.mxu0 %v1389
        %1457 = vmatmul.mubr.f32.gmra.mrb[0].mxu0 %v1386
        %v1458 = vpop.f32.mrb[0].mxu0
        %v1459 = vadd.f32 0.0, %v1458
        %v1460 = vpop.f32.mrb[0].mxu0
        %v1461 = vadd.f32 0.0, %v1460
        %1462 = vdwg.mxu0
        %v1471 = vsel %vm574, %v1169, %v1167
        %v1472 = vsel %vm576, %v1171, %v1471
        %v1473 = vsel %vm578, %v1173, %v1472
        %v1474 = vsel %vm574, %v1170, %v1168
        %v1475 = vsel %vm576, %v1172, %v1474
        %v1476 = vsel %vm578, %v1174, %v1475
        %1479 = vmatprep.subr.mxu0 %v1248
        %1480 = vmatpush1.msra.mxu0 %v1247
        %1481 = vmatprep.subr.mxu0 %v1250
        %1482 = vmatpush1.msra.mxu0 %v1249
        %1483 = vmatprep.subr.mxu0 %v1252
        %1484 = vmatpush1.msra.mxu0 %v1251
        %1485 = vmatprep.subr.mxu0 %v1254
        %1486 = vmatpush1.msra.mxu0 %v1253
        %1487 = vmatprep.subr.mxu0 %v1256
        %1488 = vmatpush1.msra.mxu0 %v1255
        %1489 = vmatprep.subr.mxu0 %v1258
        %1490 = vmatpush1.msra.mxu0 %v1257
        %1491 = vmatprep.subr.mxu0 %v1260
        %1492 = vmatpush1.msra.mxu0 %v1259
        %1493 = vmatprep.subr.mxu0 %v1262
        %1494 = vmatpush1.msra.mxu0 %v1261
        %1495 = vmatprep.subr.mxu0 %v1264
        %1496 = vmatpush1.msra.mxu0 %v1263
        %1497 = vmatprep.subr.mxu0 %v1266
        %1498 = vmatpush1.msra.mxu0 %v1265
        %1499 = vmatprep.subr.mxu0 %v1268
        %1500 = vmatpush1.msra.mxu0 %v1267
        %1501 = vmatprep.subr.mxu0 %v1270
        %1502 = vmatpush1.msra.mxu0 %v1269
        %1503 = vmatprep.subr.mxu0 %v1272
        %1504 = vmatpush1.msra.mxu0 %v1271
        %1505 = vmatprep.subr.mxu0 %v1274
        %1506 = vmatpush1.msra.mxu0 %v1273
        %1507 = vmatprep.subr.mxu0 %v1276
        %1508 = vmatpush1.msra.mxu0 %v1275
        %1509 = vmatprep.subr.mxu0 %v1278
        %1510 = vmatpush1.msra.mxu0 %v1277
        %1511 = vmatprep.subr.mxu0 %v1280
        %1512 = vmatpush1.msra.mxu0 %v1279
        %1513 = vmatprep.subr.mxu0 %v1282
        %1514 = vmatpush1.msra.mxu0 %v1281
        %1515 = vmatprep.subr.mxu0 %v1284
        %1516 = vmatpush1.msra.mxu0 %v1283
        %1517 = vmatprep.subr.mxu0 %v1286
        %1518 = vmatpush1.msra.mxu0 %v1285
        %1519 = vmatprep.subr.mxu0 %v1288
        %1520 = vmatpush1.msra.mxu0 %v1287
        %1521 = vmatprep.subr.mxu0 %v1290
        %1522 = vmatpush1.msra.mxu0 %v1289
        %1523 = vmatprep.subr.mxu0 %v1292
        %1524 = vmatpush1.msra.mxu0 %v1291
        %1525 = vmatprep.subr.mxu0 %v1294
        %1526 = vmatpush1.msra.mxu0 %v1293
        %1527 = vmatprep.subr.mxu0 %v1296
        %1528 = vmatpush1.msra.mxu0 %v1295
        %1529 = vmatprep.subr.mxu0 %v1298
        %1530 = vmatpush1.msra.mxu0 %v1297
        %1531 = vmatprep.subr.mxu0 %v1300
        %1532 = vmatpush1.msra.mxu0 %v1299
        %1533 = vmatprep.subr.mxu0 %v1302
        %1534 = vmatpush1.msra.mxu0 %v1301
        %1535 = vmatprep.subr.mxu0 %v1304
        %1536 = vmatpush1.msra.mxu0 %v1303
        %1537 = vmatprep.subr.mxu0 %v1306
        %1538 = vmatpush1.msra.mxu0 %v1305
        %1539 = vmatprep.subr.mxu0 %v1308
        %1540 = vmatpush1.msra.mxu0 %v1307
        %1541 = vmatprep.subr.mxu0 %v1310
        %1542 = vmatpush1.msra.mxu0 %v1309
        %1543 = vmatprep.mubr.f32.mxu0 %v1476
        %1544 = vmatmul.mubr.f32.gmra.mrb[0].mxu0 %v1473
        %v1545 = vpop.f32.mrb[0].mxu0
        %v1546 = vadd.f32 %v1459, %v1545
        %v1547 = vpop.f32.mrb[0].mxu0
        %v1548 = vadd.f32 %v1461, %v1547
        %1549 = vdwg.mxu0
        %s1550 = sld [smem:[#allocation2]]
        %v1551 = vstv %s1550
        %v1552 = vadd.f32 %v1546, %v1551
        %v1553 = vadd.f32 %v1548, %v1551
        %v1554 = vxor.u32 %v1552, 2147483648
        %v1555 = vxor.u32 %v1553, 2147483648
        %v1556 = vmul.f32 %v1554, 1.442695
        %v1557 = vpow.pop %v1556
        %v1558 = vmul.f32 %v1555, 1.442695
        %v1559 = vpow.pop %v1558
        %v1560 = vadd.f32 %v1557, 1.0
        %v1561 = vadd.f32 %v1559, 1.0
        %v1562 = vrcp.pop %v1560
        %v1563 = vmul.f32 1.0, %v1562
        %v1564 = vrcp.pop %v1561
        %v1565 = vmul.f32 1.0, %v1564
        %v1568 = vcombine.low %v1563, %v1565
        %v1570 = vunpack.c.l.s4 1966171168
        %v1571 = vunpack.c.0.s8 %v1570
        %v1572 = vlaneseq
        %v1573 = vshrl.u32 %v1572, 7
        %v1574 = vsub.s32 %v1571, %v1573
        %v1575 = vrot.slane %v1568, %v1574
        %v1576 = vcombine.high %v1575, %v1575
        %v1578 = vunpack.c.l.s4 1966171168
        %v1579 = vunpack.c.0.s8 %v1578
        %v1580 = vlaneseq
        %v1581 = vshrl.u32 %v1580, 7
        %v1582 = vsub.s32 %v1579, %v1581
        %v1583 = vrot.slane %v1575, %v1582
        %v1585 = vunpack.c.l.s4 1966171168
        %v1586 = vunpack.c.0.s8 %v1585
        %v1587 = vlaneseq
        %v1588 = vshrl.u32 %v1587, 7
        %v1589 = vsub.s32 %v1586, %v1588
        %v1590 = vrot.slane %v1576, %v1589
        %v1591 = vcombine.high %v1583, %v1583
        %v1592 = vcombine.high %v1590, %v1590
        %v1593 = vlaneseq
        %v1594 = vshrl.u32 %v1593, 7
        %v1595 = vsub.s32 0, %v1594
        %v1596 = vrot.slane %v1583, %v1595
        %v1597 = vlaneseq
        %v1598 = vshrl.u32 %v1597, 7
        %v1599 = vsub.s32 1, %v1598
        %v1600 = vrot.slane %v1583, %v1599
        %v1601 = vlaneseq
        %v1602 = vshrl.u32 %v1601, 7
        %v1603 = vsub.s32 0, %v1602
        %v1604 = vrot.slane %v1590, %v1603
        %v1605 = vlaneseq
        %v1606 = vshrl.u32 %v1605, 7
        %v1607 = vsub.s32 1, %v1606
        %v1608 = vrot.slane %v1590, %v1607
        %v1609 = vlaneseq
        %v1610 = vshrl.u32 %v1609, 7
        %v1611 = vsub.s32 0, %v1610
        %v1612 = vrot.slane %v1591, %v1611
        %v1613 = vlaneseq
        %v1614 = vshrl.u32 %v1613, 7
        %v1615 = vsub.s32 1, %v1614
        %v1616 = vrot.slane %v1591, %v1615
        %v1617 = vlaneseq
        %v1618 = vshrl.u32 %v1617, 7
        %v1619 = vsub.s32 0, %v1618
        %v1620 = vrot.slane %v1592, %v1619
        %v1621 = vlaneseq
        %v1622 = vshrl.u32 %v1621, 7
        %v1623 = vsub.s32 1, %v1622
        %v1624 = vrot.slane %v1592, %v1623
        %v1633 = vmul.f32 %v1062, %v1596
        %v1634 = vmul.f32 %v1063, %v1600
        %v1635 = vmul.f32 %v1064, %v1596
        %v1636 = vmul.f32 %v1065, %v1600
        %v1637 = vmul.f32 %v1066, %v1596
        %v1638 = vmul.f32 %v1067, %v1600
        %v1639 = vmul.f32 %v1068, %v1596
        %v1640 = vmul.f32 %v1069, %v1600
        %v1641 = vmul.f32 %v1070, %v1604
        %v1642 = vmul.f32 %v1071, %v1608
        %v1643 = vmul.f32 %v1072, %v1604
        %v1644 = vmul.f32 %v1073, %v1608
        %v1645 = vmul.f32 %v1074, %v1604
        %v1646 = vmul.f32 %v1075, %v1608
        %v1647 = vmul.f32 %v1076, %v1604
        %v1648 = vmul.f32 %v1077, %v1608
        %v1649 = vmul.f32 %v1078, %v1612
        %v1650 = vmul.f32 %v1079, %v1616
        %v1651 = vmul.f32 %v1080, %v1612
        %v1652 = vmul.f32 %v1081, %v1616
        %v1653 = vmul.f32 %v1082, %v1612
        %v1654 = vmul.f32 %v1083, %v1616
        %v1655 = vmul.f32 %v1084, %v1612
        %v1656 = vmul.f32 %v1085, %v1616
        %v1657 = vmul.f32 %v1086, %v1620
        %v1658 = vmul.f32 %v1087, %v1624
        %v1659 = vmul.f32 %v1088, %v1620
        %v1660 = vmul.f32 %v1089, %v1624
        %v1661 = vmul.f32 %v1090, %v1620
        %v1662 = vmul.f32 %v1091, %v1624
        %v1663 = vmul.f32 %v1092, %v1620
        %v1664 = vmul.f32 %v1093, %v1624
        %1665 = vst [vmem:[%s313] sm:$0xff] %v1633
        %1666 = vst [vmem:[%s313 + $0x8] sm:$0xff] %v1634
        %1667 = vst [vmem:[%s313 + $0x10] sm:$0xff] %v1635
        %1668 = vst [vmem:[%s313 + $0x18] sm:$0xff] %v1636
        %1669 = vst [vmem:[%s313 + $0x20] sm:$0xff] %v1637
        %1670 = vst [vmem:[%s313 + $0x28] sm:$0xff] %v1638
        %1671 = vst [vmem:[%s313 + $0x30] sm:$0xff] %v1639
        %1672 = vst [vmem:[%s313 + $0x38] sm:$0xff] %v1640
        %1673 = vst [vmem:[%s313 + $0x40] sm:$0xff] %v1641
        %1674 = vst [vmem:[%s313 + $0x48] sm:$0xff] %v1642
        %1675 = vst [vmem:[%s313 + $0x50] sm:$0xff] %v1643
        %1676 = vst [vmem:[%s313 + $0x58] sm:$0xff] %v1644
        %1677 = vst [vmem:[%s313 + $0x60] sm:$0xff] %v1645
        %1678 = vst [vmem:[%s313 + $0x68] sm:$0xff] %v1646
        %1679 = vst [vmem:[%s313 + $0x70] sm:$0xff] %v1647
        %1680 = vst [vmem:[%s313 + $0x78] sm:$0xff] %v1648
        %1681 = vst [vmem:[%s313 + $0x80] sm:$0xff] %v1649
        %1682 = vst [vmem:[%s313 + $0x88] sm:$0xff] %v1650
        %1683 = vst [vmem:[%s313 + $0x90] sm:$0xff] %v1651
        %1684 = vst [vmem:[%s313 + $0x98] sm:$0xff] %v1652
        %1685 = vst [vmem:[%s313 + $0xa0] sm:$0xff] %v1653
        %1686 = vst [vmem:[%s313 + $0xa8] sm:$0xff] %v1654
        %1687 = vst [vmem:[%s313 + $0xb0] sm:$0xff] %v1655
        %1688 = vst [vmem:[%s313 + $0xb8] sm:$0xff] %v1656
        %1689 = vst [vmem:[%s313 + $0xc0] sm:$0xff] %v1657
        %1690 = vst [vmem:[%s313 + $0xc8] sm:$0xff] %v1658
        %1691 = vst [vmem:[%s313 + $0xd0] sm:$0xff] %v1659
        %1692 = vst [vmem:[%s313 + $0xd8] sm:$0xff] %v1660
        %1693 = vst [vmem:[%s313 + $0xe0] sm:$0xff] %v1661
        %1694 = vst [vmem:[%s313 + $0xe8] sm:$0xff] %v1662
        %1695 = vst [vmem:[%s313 + $0xf0] sm:$0xff] %v1663
        %1696 = vst [vmem:[%s313 + $0xf8] sm:$0xff] %v1664
        %s1697 = sand.u32 %s186, 1
        %s1698 = scalar_lea.sflag [#allocation5], %s1697
        %s1699 = sand.u32 %s186, 1
        %s1700 = smul.addr %s1699, 256
        %s1701 = scalar_lea.vmem [#allocation8], %s1700
        // Predicated region
        $region57: #{tpu_custom_call.1} parent=47 // pred_check
          %p1702 = pneg %p196
        $region58: #{tpu_custom_call.1} parent=47 // pred_check_branch
          %1704 = sbr.rel (%p1702) target = $region60
        $region59: #{tpu_custom_call.1} parent=47 // pred_region
          %s1705 = smul.u32 4, %s26
          %s1707 = ssub.s32 4096, 4096
          %1708 = vsyncadd %s1698, %s1707
          %s1709 = smul.addr %s1705, 8
          %s1710 = smul.addr %s1709, 128
          %s1711 = scalar_lea.hbm %s7, %s1710
          %s1712 = sshll.u32 %s1701, 4
          %s1713 = int_to_ptr.vmem [resolvable:$true] %s1712
          %1718 = dma.vmem_to_hbm [thread:$0]  %s1713, 4096, %s1711, %s1698, 256, 256, 16
        $region60: #{tpu_custom_call.1} parent=47 // pred_fallthru
          _
      $region48: #{tpu_custom_call.1} parent=5 // pred_fallthru
        _
      %p1719 = scmp.le.s32.totalorder 2, %s21
      // Predicated region
      $region61: #{tpu_custom_call.1} parent=5 // pred_check
        %p1720 = pneg %p1719
      $region62: #{tpu_custom_call.1} parent=5 // pred_check_branch
        %1722 = sbr.rel (%p1720) target = $region64
      $region63: #{tpu_custom_call.1} parent=5 // pred_region
        %s1723 = ssub.s32 %s21, 2
        // Predicated region
        $region65: #{tpu_custom_call.1} parent=63 // pred_check
          %p1724 = pneg %p202
        $region66: #{tpu_custom_call.1} parent=63 // pred_check_branch
          %1726 = sbr.rel (%p1724) target = $region68
        $region67: #{tpu_custom_call.1} parent=63 // pred_region
          %s1727 = sand.u32 %s187, 1
          %s1728 = scalar_lea.sflag [#allocation5], %s1727
          %s1729 = sand.u32 %s187, 1
          %s1730 = smul.addr %s1729, 256
          %s1731 = scalar_lea.vmem [#allocation8], %s1730
          %1732 = dma.done %s1728, 4096
        $region68: #{tpu_custom_call.1} parent=63 // pred_fallthru
          _
      $region64: #{tpu_custom_call.1} parent=5 // pred_fallthru
        _
    $region6: #{tpu_custom_call.1} parent=1 // loop_footer
      %s25 = sadd.s32 1, %s21
    $region7: #{tpu_custom_call.1} parent=1 // loop_footer_branch
      %20 = sbr.rel target = $region3
    $region8: #{tpu_custom_call.1} parent=1 // loop_exit
      _
    %1733 = vsyncpa [#allocation4], 1
    %s1734 = scalar_lea.sflag [#allocation4], 1
    %1735 = vsyncpa %s1734, 1
    %1736 = vsyncpa [#allocation7], 1
    %1737 = vsyncpa [#allocation5], 1
    %s1738 = scalar_lea.sflag [#allocation5], 1
    %1739 = vsyncpa %s1738, 1

</llo_original>
